<compile_context>
chip_gen: v7x
topology: tpu7x:2x2x1
jax: 0.10.0
libtpu: 0.0.40
codegen_flags: <defaults>
</compile_context>

<pallas_src>
import functools

import jax
import jax.numpy as jnp
from jax.experimental import pallas as pl
from jax.experimental.pallas import tpu as pltpu


def _convgru_kernel(x_ref, h_ref, w1_ref, w2_ref, bg_ref, bc_ref, m_ref,
                    o_ref,
                    pad_ref, col_ref,
                    *, Ch, Cin, Cc_pad, K, W, OFF0, N):
    """One lane-block (Bt batch elements) of the ConvGRU cell.

    x_ref  : (Cin, N) bf16        input slab (N = Bt*H*W lanes)
    h_ref  : (Ch,  N) f32         previous hidden state slab
    w1_ref : (3*Ch, K*K*Cc_pad) bf16  fused [gates ; candidate-x-only] weights
    w2_ref : (Ch,   K*K*Cc_pad) bf16  candidate h-only weights (x/pad cols = 0)
    bg_ref : (2*Ch, 1) f32, bc_ref : (Ch, 1) f32
    m_ref  : (K*K, 1, N) bf16     per-tap in-bounds masks (tiled over Bt)
    o_ref  : (Ch, N)              new hidden state slab
    pad_ref: (Cc_pad, OFF0+N+OFF0) bf16  flat zero-padded staging scratch
    col_ref: (K*K*Cc_pad, N) bf16 im2col scratch (per-tap rows: [h; x; pad])
    """
    KK = K * K
    P = K // 2
    Cc = Ch + Cin

    # Zero the halo slabs every step (cheap: a few vector stores).  Re-done per
    # step so correctness never depends on which TensorCore handles which grid
    # index under megacore sharding.
    halo = jnp.zeros((Cc_pad, OFF0), jnp.bfloat16)
    pad_ref[:, :OFF0] = halo
    pad_ref[:, OFF0 + N:] = halo

    # Stage [h ; x ; zero-pad] into the padded scratch (channels on sublanes).
    h = h_ref[...]                                         # (Ch, N) f32
    pad_ref[0:Ch, OFF0:OFF0 + N] = h.astype(jnp.bfloat16)  # aligned (Ch % 8 == 0)
    xz = x_ref[...]                                        # (Cin, N) bf16
    if Cc_pad > Cc:
        xz = jnp.concatenate(
            [xz, jnp.zeros((Cc_pad - Cc, N), jnp.bfloat16)], axis=0)
    pad_ref[Ch:Cc_pad, OFF0:OFF0 + N] = xz                 # aligned write

    # In-kernel im2col: K*K static lane-shifted window reads, masked at image
    # borders, written straight into the bf16 col scratch (no concat pass).
    def build_cols(n_rows):
        for t in range(KK):
            ky, kx = t // K, t % K
            off = (ky - P) * W + (kx - P)                  # static lane shift
            win = pad_ref[0:n_rows, OFF0 + off:OFF0 + off + N]
            col_ref[t * Cc_pad:t * Cc_pad + n_rows, :] = win * m_ref[t]

    build_cols(Cc_pad)

    # Fused gates + candidate-x conv: ONE MXU matmul with 3*Ch output rows and
    # contraction K*K*Cc_pad (larger contraction -> better MXU fill).
    g = jnp.dot(w1_ref[...], col_ref[...],
                preferred_element_type=jnp.float32)        # (3*Ch, N)
    gates = g[:2 * Ch] + bg_ref[...]                       # (2*Ch, N)
    reset_gate = jax.nn.sigmoid(gates[:Ch])                # (Ch, N)
    update_gate = jax.nn.sigmoid(gates[Ch:])               # (Ch, N)

    # Candidate: overwrite only the h rows of the scratch with reset*h (aligned,
    # offset 0) and rebuild the h rows of the col scratch; the stale x/pad rows
    # are annihilated by w2's zero columns.
    pad_ref[0:Ch, OFF0:OFF0 + N] = (reset_gate * h).astype(jnp.bfloat16)
    build_cols(Ch)
    cand = jnp.tanh(g[2 * Ch:] +
                    jnp.dot(w2_ref[...], col_ref[...],
                            preferred_element_type=jnp.float32) +
                    bc_ref[...])                           # (Ch, N)

    # new_h = (1 - u) * h + u * cand
    o_ref[...] = (h + update_gate * (cand - h)).astype(o_ref.dtype)


def conv_gru_cell(x, h, wg, bg, wc, bc, *, kernel_size):
    """ConvGRUCell forward, NCHW interface mirroring the PyTorch module.

    x  : (B, Cin, H, W) f32
    h  : (B, Ch,  H, W) f32 or None (treated as zeros, as in the module)
    wg : (2*Ch, Cin+Ch, K, K) OIHW gate conv weight,      bg: (2*Ch,)
    wc : (Ch,   Cin+Ch, K, K) OIHW candidate conv weight, bc: (Ch,)
    Returns the new hidden state, (B, Ch, H, W).
    """
    B, Cin, H, W = x.shape
    Ch = wc.shape[0]
    K = kernel_size
    P = K // 2
    HW = H * W
    Cc = Cin + Ch
    KK = K * K
    assert wg.shape == (2 * Ch, Cc, K, K) and wc.shape == (Ch, Cc, K, K)
    # Lane-dense / sublane-aligned layout guards (feedback: avoid silent
    # vst.msk partial stores and relayout copies on the gate row splits).
    assert HW % 128 == 0, "H*W must be a multiple of 128 (lane-dense layout)"
    assert Ch % 8 == 0, "hidden_dim must be a multiple of 8 (sublane splits)"

    if h is None:
        h = jnp.zeros((B, Ch, H, W), x.dtype)

    Cc_pad = -(-Cc // 8) * 8                 # per-tap channel rows, 8-aligned

    # ---- channel-major, batch*spatial-on-lanes layout (layout plumbing) -----
    x_l = jnp.transpose(x, (1, 0, 2, 3)).reshape(Cin, B * HW).astype(jnp.bfloat16)
    h_l = jnp.transpose(h, (1, 0, 2, 3)).reshape(Ch, B * HW).astype(jnp.float32)

    # ---- weights: OIHW -> (Cout, K*K*Cc_pad), per-tap channel order [h; x; 0]
    perm = list(range(Cin, Cc)) + list(range(Cin))   # h channels first, then x
    wg_r = wg[:, perm]
    wc_r = wc[:, perm]

    def to_mat(w):            # (Cout, Cc, K, K) -> (Cout, KK*Cc_pad)
        cout = w.shape[0]
        wt = jnp.transpose(w, (0, 2, 3, 1))          # (Cout, K, K, Cc)
        if Cc_pad > Cc:
            wt = jnp.pad(wt, ((0, 0), (0, 0), (0, 0), (0, Cc_pad - Cc)))
        return wt.reshape(cout, KK * Cc_pad)

    wc_x_only = wc_r.at[:, :Ch].set(0.0)     # candidate: keep x cols, zero h
    wc_h_only = wc_r.at[:, Ch:].set(0.0)     # candidate: keep h cols, zero x
    w1 = to_mat(jnp.concatenate([wg_r, wc_x_only], axis=0)).astype(jnp.bfloat16)
    w2 = to_mat(wc_h_only).astype(jnp.bfloat16)
    bg2 = bg.reshape(2 * Ch, 1).astype(jnp.float32)
    bc2 = bc.reshape(Ch, 1).astype(jnp.float32)

    # ---- lane-aligned halo width for the flat padded scratch -----------------
    OFF0 = max(128, -(-(P * W + P) // 128) * 128)

    # ---- batch tile: put Bt*HW on the matmul N/lane axis (amortizes grid-step
    # overhead and fills the MXU), sized so blocks stay well inside scoped VMEM
    # on every generation (v7x has only 64 MiB physical / 32 MiB scoped).
    per_col = (KK * Cc_pad * 2 + Cc_pad * 2          # col + pad scratches (bf16)
               + 2 * Cin * 2 + 2 * Ch * 4 + 2 * Ch * 4  # dbl-buffered x/h/out
               + KK * 2                              # masks
               + 8 * Ch * 4)                         # f32 intermediates headroom
    budget = 12 << 20
    Bt = 1
    for d in range(B, 0, -1):
        if B % d == 0 and d * HW * per_col <= budget:
            Bt = d
            break
    N = Bt * HW
    # TODO(synk): for very large H*W (even Bt=1 exceeds the budget) add a
    # spatial row-tile grid axis with a (K-1)-row halo instead of full-HW blocks.

    # ---- tiny per-tap in-bounds masks (spatial only, tiled over Bt) ----------
    ys, xs = jnp.meshgrid(jnp.arange(H), jnp.arange(W), indexing="ij")
    ys, xs = ys.reshape(HW), xs.reshape(HW)
    masks = jnp.stack(
        [((ys + ky - P >= 0) & (ys + ky - P < H) &
          (xs + kx - P >= 0) & (xs + kx - P < W))
         for ky in range(K) for kx in range(K)], axis=0)            # (KK, HW)
    masks = jnp.tile(masks, (1, Bt))[:, None, :].astype(jnp.bfloat16)  # (KK,1,N)

    kernel = functools.partial(_convgru_kernel, Ch=Ch, Cin=Cin, Cc_pad=Cc_pad,
                               K=K, W=W, OFF0=OFF0, N=N)
    full = lambda s: pl.BlockSpec(s, lambda i: (0,) * len(s))

    out = pl.pallas_call(
        kernel,
        out_shape=jax.ShapeDtypeStruct((Ch, B * HW), jnp.float32),
        grid_spec=pltpu.PrefetchScalarGridSpec(
            num_scalar_prefetch=0,
            grid=(B // Bt,),
            in_specs=[
                pl.BlockSpec((Cin, N), lambda i: (0, i)),
                pl.BlockSpec((Ch, N), lambda i: (0, i)),
                full((3 * Ch, KK * Cc_pad)),
                full((Ch, KK * Cc_pad)),
                full((2 * Ch, 1)),
                full((Ch, 1)),
                full((KK, 1, N)),
            ],
            out_specs=pl.BlockSpec((Ch, N), lambda i: (0, i)),
            scratch_shapes=[
                pltpu.VMEM((Cc_pad, OFF0 + N + OFF0), jnp.bfloat16),
                pltpu.VMEM((KK * Cc_pad, N), jnp.bfloat16),
            ],
        ),
        compiler_params=pltpu.CompilerParams(
            dimension_semantics=("parallel",),
            vmem_limit_bytes=32 * 1024 * 1024),
    )(x_l, h_l, w1, w2, bg2, bc2, masks)

    out = out.reshape(Ch, B, H, W).transpose(1, 0, 2, 3)
    return out.astype(x.dtype)


def conv_gru_cell_ref(x, h, wg, bg, wc, bc):
    """Pure-JAX reference mirroring the PyTorch forward (NCHW / OIHW)."""
    Ch = wc.shape[0]

    def conv(inp, w, b):
        out = jax.lax.conv_general_dilated(
            inp, w, window_strides=(1, 1), padding="SAME",
            dimension_numbers=("NCHW", "OIHW", "NCHW"))
        return out + b[None, :, None, None]

    combined = jnp.concatenate([x, h], axis=1)
    gates = conv(combined, wg, bg)
    gamma, beta = gates[:, :Ch], gates[:, Ch:]
    reset_gate = jax.nn.sigmoid(gamma)
    update_gate = jax.nn.sigmoid(beta)
    combined_reset = jnp.concatenate([x, reset_gate * h], axis=1)
    cand = jnp.tanh(conv(combined_reset, wc, bc))
    return (1.0 - update_gate) * h + update_gate * cand


if __name__ == "__main__":
    B, Cin, Ch, H, W, K = 2, 4, 8, 16, 16, 3
    Cc = Cin + Ch

    key = jax.random.PRNGKey(0)
    kx, kh, kwg, kbg, kwc, kbc = jax.random.split(key, 6)

    x = jax.random.normal(kx, (B, Cin, H, W), jnp.float32)
    h = jax.random.normal(kh, (B, Ch, H, W), jnp.float32)

    # Conv2d-style parameters (OIHW), deterministic.
    scale = 1.0 / (Cc * K * K) ** 0.5
    wg = jax.random.uniform(kwg, (2 * Ch, Cc, K, K), jnp.float32, -scale, scale)
    bg = jax.random.uniform(kbg, (2 * Ch,), jnp.float32, -scale, scale)
    wc = jax.random.uniform(kwc, (Ch, Cc, K, K), jnp.float32, -scale, scale)
    bc = jax.random.uniform(kbc, (Ch,), jnp.float32, -scale, scale)

    out = conv_gru_cell(x, h, wg, bg, wc, bc, kernel_size=K)
    out = jax.block_until_ready(out)
    assert out.shape == (B, Ch, H, W)

    ref = conv_gru_cell_ref(x, h, wg, bg, wc, bc)
    err = float(jnp.max(jnp.abs(out - ref)))
    # bf16 matmul operands with f32 accumulation -> relaxed tolerance.
    assert jnp.allclose(out, ref, atol=3e-2, rtol=3e-2), err

    print("KERNEL_OK")
</pallas_src>

<mosaic_0001>
module attributes {stable_mosaic.version = 11 : i64} {
  func.func @_convgru_kernel(%arg0: i32, %arg1: memref<4x512xbf16, #tpu.memory_space<vmem>>, %arg2: memref<8x512xf32, #tpu.memory_space<vmem>>, %arg3: memref<24x144xbf16, #tpu.memory_space<vmem>>, %arg4: memref<8x144xbf16, #tpu.memory_space<vmem>>, %arg5: memref<16x1xf32, #tpu.memory_space<vmem>>, %arg6: memref<8x1xf32, #tpu.memory_space<vmem>>, %arg7: memref<9x1x512xbf16, #tpu.memory_space<vmem>>, %arg8: memref<8x512xf32, #tpu.memory_space<vmem>>, %arg9: memref<16x768xbf16, #tpu.memory_space<vmem>>, %arg10: memref<144x512xbf16, #tpu.memory_space<vmem>>) attributes {dimension_semantics = [#tpu.dimension_semantics<parallel>], iteration_bounds = array<i64: 1>, scalar_prefetch = 0 : i64, scratch_operands = 2 : i64, tpu.core_type = #tpu.core_type<tc>, window_params = [{transform_indices = @transform_0, window_bounds = array<i64: 4, 512>}, {transform_indices = @transform_1, window_bounds = array<i64: 8, 512>}, {pipeline_mode = #tpu.pipeline_mode<synchronous>, transform_indices = @transform_2, window_bounds = array<i64: 24, 144>}, {pipeline_mode = #tpu.pipeline_mode<synchronous>, transform_indices = @transform_3, window_bounds = array<i64: 8, 144>}, {pipeline_mode = #tpu.pipeline_mode<synchronous>, transform_indices = @transform_4, window_bounds = array<i64: 16, 1>}, {pipeline_mode = #tpu.pipeline_mode<synchronous>, transform_indices = @transform_5, window_bounds = array<i64: 8, 1>}, {pipeline_mode = #tpu.pipeline_mode<synchronous>, transform_indices = @transform_6, window_bounds = array<i64: 9, 1, 512>}, {transform_indices = @transform_7, window_bounds = array<i64: 8, 512>}]} {
    %cst = arith.constant 0.000000e+00 : bf16
    %0 = vector.broadcast %cst : bf16 to vector<16x128xbf16>
    %c0 = arith.constant 0 : index
    %c0_0 = arith.constant 0 : index
    %1 = vector.load %arg9[%c0, %c0_0] : memref<16x768xbf16, #tpu.memory_space<vmem>>, vector<16x128xbf16>
    tpu.vector_store %arg9[%c0, %c0_0], %0 {strides = array<i32>} : memref<16x768xbf16, #tpu.memory_space<vmem>>, vector<16x128xbf16>,
    %c0_1 = arith.constant 0 : index
    %c640 = arith.constant 640 : index
    %2 = vector.load %arg9[%c0_1, %c640] : memref<16x768xbf16, #tpu.memory_space<vmem>>, vector<16x128xbf16>
    tpu.vector_store %arg9[%c0_1, %c640], %0 {strides = array<i32>} : memref<16x768xbf16, #tpu.memory_space<vmem>>, vector<16x128xbf16>,
    %c0_2 = arith.constant 0 : index
    %c0_3 = arith.constant 0 : index
    %3 = vector.load %arg2[%c0_2, %c0_3] : memref<8x512xf32, #tpu.memory_space<vmem>>, vector<8x512xf32>
    %4 = arith.truncf %3 : vector<8x512xf32> to vector<8x512xbf16>
    %c0_4 = arith.constant 0 : index
    %c128 = arith.constant 128 : index
    %5 = vector.load %arg9[%c0_4, %c128] : memref<16x768xbf16, #tpu.memory_space<vmem>>, vector<8x512xbf16>
    tpu.vector_store %arg9[%c0_4, %c128], %4 {strides = array<i32>} : memref<16x768xbf16, #tpu.memory_space<vmem>>, vector<8x512xbf16>,
    %c0_5 = arith.constant 0 : index
    %c0_6 = arith.constant 0 : index
    %6 = vector.load %arg1[%c0_5, %c0_6] : memref<4x512xbf16, #tpu.memory_space<vmem>>, vector<4x512xbf16>
    %cst_7 = arith.constant 0.000000e+00 : bf16
    %7 = vector.broadcast %cst_7 : bf16 to vector<4x512xbf16>
    %8 = tpu.concatenate %6, %7 in 0 : vector<4x512xbf16>, vector<4x512xbf16> -> vector<8x512xbf16>
    %c8 = arith.constant 8 : index
    %c128_8 = arith.constant 128 : index
    %9 = vector.load %arg9[%c8, %c128_8] : memref<16x768xbf16, #tpu.memory_space<vmem>>, vector<8x512xbf16>
    tpu.vector_store %arg9[%c8, %c128_8], %8 {strides = array<i32>} : memref<16x768xbf16, #tpu.memory_space<vmem>>, vector<8x512xbf16>,
    %c0_9 = arith.constant 0 : index
    %c111 = arith.constant 111 : index
    %10 = vector.load %arg9[%c0_9, %c111] : memref<16x768xbf16, #tpu.memory_space<vmem>>, vector<16x512xbf16>
    %c0_10 = arith.constant 0 : index
    %c0_11 = arith.constant 0 : index
    %c0_12 = arith.constant 0 : index
    %11 = vector.load %arg7[%c0_10, %c0_11, %c0_12] : memref<9x1x512xbf16, #tpu.memory_space<vmem>>, vector<1x1x512xbf16>
    %12 = vector.shape_cast %11 : vector<1x1x512xbf16> to vector<1x512xbf16>
    %13 = vector.broadcast %12 : vector<1x512xbf16> to vector<16x512xbf16>
    %14 = arith.mulf %10, %13 : vector<16x512xbf16>
    %c0_13 = arith.constant 0 : index
    %c0_14 = arith.constant 0 : index
    %15 = vector.load %arg10[%c0_13, %c0_14] : memref<144x512xbf16, #tpu.memory_space<vmem>>, vector<16x512xbf16>
    tpu.vector_store %arg10[%c0_13, %c0_14], %14 {strides = array<i32>} : memref<144x512xbf16, #tpu.memory_space<vmem>>, vector<16x512xbf16>,
    %c0_15 = arith.constant 0 : index
    %c112 = arith.constant 112 : index
    %16 = vector.load %arg9[%c0_15, %c112] : memref<16x768xbf16, #tpu.memory_space<vmem>>, vector<16x512xbf16>
    %c1 = arith.constant 1 : index
    %c0_16 = arith.constant 0 : index
    %c0_17 = arith.constant 0 : index
    %17 = vector.load %arg7[%c1, %c0_16, %c0_17] : memref<9x1x512xbf16, #tpu.memory_space<vmem>>, vector<1x1x512xbf16>
    %18 = vector.shape_cast %17 : vector<1x1x512xbf16> to vector<1x512xbf16>
    %19 = vector.broadcast %18 : vector<1x512xbf16> to vector<16x512xbf16>
    %20 = arith.mulf %16, %19 : vector<16x512xbf16>
    %c16 = arith.constant 16 : index
    %c0_18 = arith.constant 0 : index
    %21 = vector.load %arg10[%c16, %c0_18] : memref<144x512xbf16, #tpu.memory_space<vmem>>, vector<16x512xbf16>
    tpu.vector_store %arg10[%c16, %c0_18], %20 {strides = array<i32>} : memref<144x512xbf16, #tpu.memory_space<vmem>>, vector<16x512xbf16>,
    %c0_19 = arith.constant 0 : index
    %c113 = arith.constant 113 : index
    %22 = vector.load %arg9[%c0_19, %c113] : memref<16x768xbf16, #tpu.memory_space<vmem>>, vector<16x512xbf16>
    %c2 = arith.constant 2 : index
    %c0_20 = arith.constant 0 : index
    %c0_21 = arith.constant 0 : index
    %23 = vector.load %arg7[%c2, %c0_20, %c0_21] : memref<9x1x512xbf16, #tpu.memory_space<vmem>>, vector<1x1x512xbf16>
    %24 = vector.shape_cast %23 : vector<1x1x512xbf16> to vector<1x512xbf16>
    %25 = vector.broadcast %24 : vector<1x512xbf16> to vector<16x512xbf16>
    %26 = arith.mulf %22, %25 : vector<16x512xbf16>
    %c32 = arith.constant 32 : index
    %c0_22 = arith.constant 0 : index
    %27 = vector.load %arg10[%c32, %c0_22] : memref<144x512xbf16, #tpu.memory_space<vmem>>, vector<16x512xbf16>
    tpu.vector_store %arg10[%c32, %c0_22], %26 {strides = array<i32>} : memref<144x512xbf16, #tpu.memory_space<vmem>>, vector<16x512xbf16>,
    %c0_23 = arith.constant 0 : index
    %c127 = arith.constant 127 : index
    %28 = vector.load %arg9[%c0_23, %c127] : memref<16x768xbf16, #tpu.memory_space<vmem>>, vector<16x512xbf16>
    %c3 = arith.constant 3 : index
    %c0_24 = arith.constant 0 : index
    %c0_25 = arith.constant 0 : index
    %29 = vector.load %arg7[%c3, %c0_24, %c0_25] : memref<9x1x512xbf16, #tpu.memory_space<vmem>>, vector<1x1x512xbf16>
    %30 = vector.shape_cast %29 : vector<1x1x512xbf16> to vector<1x512xbf16>
    %31 = vector.broadcast %30 : vector<1x512xbf16> to vector<16x512xbf16>
    %32 = arith.mulf %28, %31 : vector<16x512xbf16>
    %c48 = arith.constant 48 : index
    %c0_26 = arith.constant 0 : index
    %33 = vector.load %arg10[%c48, %c0_26] : memref<144x512xbf16, #tpu.memory_space<vmem>>, vector<16x512xbf16>
    tpu.vector_store %arg10[%c48, %c0_26], %32 {strides = array<i32>} : memref<144x512xbf16, #tpu.memory_space<vmem>>, vector<16x512xbf16>,
    %c0_27 = arith.constant 0 : index
    %c128_28 = arith.constant 128 : index
    %34 = vector.load %arg9[%c0_27, %c128_28] : memref<16x768xbf16, #tpu.memory_space<vmem>>, vector<16x512xbf16>
    %c4 = arith.constant 4 : index
    %c0_29 = arith.constant 0 : index
    %c0_30 = arith.constant 0 : index
    %35 = vector.load %arg7[%c4, %c0_29, %c0_30] : memref<9x1x512xbf16, #tpu.memory_space<vmem>>, vector<1x1x512xbf16>
    %36 = vector.shape_cast %35 : vector<1x1x512xbf16> to vector<1x512xbf16>
    %37 = vector.broadcast %36 : vector<1x512xbf16> to vector<16x512xbf16>
    %38 = arith.mulf %34, %37 : vector<16x512xbf16>
    %c64 = arith.constant 64 : index
    %c0_31 = arith.constant 0 : index
    %39 = vector.load %arg10[%c64, %c0_31] : memref<144x512xbf16, #tpu.memory_space<vmem>>, vector<16x512xbf16>
    tpu.vector_store %arg10[%c64, %c0_31], %38 {strides = array<i32>} : memref<144x512xbf16, #tpu.memory_space<vmem>>, vector<16x512xbf16>,
    %c0_32 = arith.constant 0 : index
    %c129 = arith.constant 129 : index
    %40 = vector.load %arg9[%c0_32, %c129] : memref<16x768xbf16, #tpu.memory_space<vmem>>, vector<16x512xbf16>
    %c5 = arith.constant 5 : index
    %c0_33 = arith.constant 0 : index
    %c0_34 = arith.constant 0 : index
    %41 = vector.load %arg7[%c5, %c0_33, %c0_34] : memref<9x1x512xbf16, #tpu.memory_space<vmem>>, vector<1x1x512xbf16>
    %42 = vector.shape_cast %41 : vector<1x1x512xbf16> to vector<1x512xbf16>
    %43 = vector.broadcast %42 : vector<1x512xbf16> to vector<16x512xbf16>
    %44 = arith.mulf %40, %43 : vector<16x512xbf16>
    %c80 = arith.constant 80 : index
    %c0_35 = arith.constant 0 : index
    %45 = vector.load %arg10[%c80, %c0_35] : memref<144x512xbf16, #tpu.memory_space<vmem>>, vector<16x512xbf16>
    tpu.vector_store %arg10[%c80, %c0_35], %44 {strides = array<i32>} : memref<144x512xbf16, #tpu.memory_space<vmem>>, vector<16x512xbf16>,
    %c0_36 = arith.constant 0 : index
    %c143 = arith.constant 143 : index
    %46 = vector.load %arg9[%c0_36, %c143] : memref<16x768xbf16, #tpu.memory_space<vmem>>, vector<16x512xbf16>
    %c6 = arith.constant 6 : index
    %c0_37 = arith.constant 0 : index
    %c0_38 = arith.constant 0 : index
    %47 = vector.load %arg7[%c6, %c0_37, %c0_38] : memref<9x1x512xbf16, #tpu.memory_space<vmem>>, vector<1x1x512xbf16>
    %48 = vector.shape_cast %47 : vector<1x1x512xbf16> to vector<1x512xbf16>
    %49 = vector.broadcast %48 : vector<1x512xbf16> to vector<16x512xbf16>
    %50 = arith.mulf %46, %49 : vector<16x512xbf16>
    %c96 = arith.constant 96 : index
    %c0_39 = arith.constant 0 : index
    %51 = vector.load %arg10[%c96, %c0_39] : memref<144x512xbf16, #tpu.memory_space<vmem>>, vector<16x512xbf16>
    tpu.vector_store %arg10[%c96, %c0_39], %50 {strides = array<i32>} : memref<144x512xbf16, #tpu.memory_space<vmem>>, vector<16x512xbf16>,
    %c0_40 = arith.constant 0 : index
    %c144 = arith.constant 144 : index
    %52 = vector.load %arg9[%c0_40, %c144] : memref<16x768xbf16, #tpu.memory_space<vmem>>, vector<16x512xbf16>
    %c7 = arith.constant 7 : index
    %c0_41 = arith.constant 0 : index
    %c0_42 = arith.constant 0 : index
    %53 = vector.load %arg7[%c7, %c0_41, %c0_42] : memref<9x1x512xbf16, #tpu.memory_space<vmem>>, vector<1x1x512xbf16>
    %54 = vector.shape_cast %53 : vector<1x1x512xbf16> to vector<1x512xbf16>
    %55 = vector.broadcast %54 : vector<1x512xbf16> to vector<16x512xbf16>
    %56 = arith.mulf %52, %55 : vector<16x512xbf16>
    %c112_43 = arith.constant 112 : index
    %c0_44 = arith.constant 0 : index
    %57 = vector.load %arg10[%c112_43, %c0_44] : memref<144x512xbf16, #tpu.memory_space<vmem>>, vector<16x512xbf16>
    tpu.vector_store %arg10[%c112_43, %c0_44], %56 {strides = array<i32>} : memref<144x512xbf16, #tpu.memory_space<vmem>>, vector<16x512xbf16>,
    %c0_45 = arith.constant 0 : index
    %c145 = arith.constant 145 : index
    %58 = vector.load %arg9[%c0_45, %c145] : memref<16x768xbf16, #tpu.memory_space<vmem>>, vector<16x512xbf16>
    %c8_46 = arith.constant 8 : index
    %c0_47 = arith.constant 0 : index
    %c0_48 = arith.constant 0 : index
    %59 = vector.load %arg7[%c8_46, %c0_47, %c0_48] : memref<9x1x512xbf16, #tpu.memory_space<vmem>>, vector<1x1x512xbf16>
    %60 = vector.shape_cast %59 : vector<1x1x512xbf16> to vector<1x512xbf16>
    %61 = vector.broadcast %60 : vector<1x512xbf16> to vector<16x512xbf16>
    %62 = arith.mulf %58, %61 : vector<16x512xbf16>
    %c128_49 = arith.constant 128 : index
    %c0_50 = arith.constant 0 : index
    %63 = vector.load %arg10[%c128_49, %c0_50] : memref<144x512xbf16, #tpu.memory_space<vmem>>, vector<16x512xbf16>
    tpu.vector_store %arg10[%c128_49, %c0_50], %62 {strides = array<i32>} : memref<144x512xbf16, #tpu.memory_space<vmem>>, vector<16x512xbf16>,
    %c0_51 = arith.constant 0 : index
    %c0_52 = arith.constant 0 : index
    %64 = vector.load %arg3[%c0_51, %c0_52] : memref<24x144xbf16, #tpu.memory_space<vmem>>, vector<24x144xbf16>
    %c0_53 = arith.constant 0 : index
    %c0_54 = arith.constant 0 : index
    %65 = vector.load %arg10[%c0_53, %c0_54] : memref<144x512xbf16, #tpu.memory_space<vmem>>, vector<144x512xbf16>
    %cst_55 = arith.constant dense<0.000000e+00> : vector<24x512xf32>
    %66 = tpu.matmul %64, %65, %cst_55 {dimension_numbers = #tpu.dot_dimension_numbers<[1], [0], [0], [1], [0, 0, 1, 1], [], []>} : vector<24x144xbf16>, vector<144x512xbf16>, vector<24x512xf32> -> vector<24x512xf32>
    %67 = vector.extract_strided_slice %66 {offsets = [0, 0], sizes = [16, 512], strides = [1, 1]} : vector<24x512xf32> to vector<16x512xf32>
    %c0_56 = arith.constant 0 : index
    %c0_57 = arith.constant 0 : index
    %68 = vector.load %arg5[%c0_56, %c0_57] : memref<16x1xf32, #tpu.memory_space<vmem>>, vector<16x1xf32>
    %69 = vector.broadcast %68 : vector<16x1xf32> to vector<16x512xf32>
    %70 = arith.addf %67, %69 : vector<16x512xf32>
    %71 = vector.extract_strided_slice %70 {offsets = [0, 0], sizes = [8, 512], strides = [1, 1]} : vector<16x512xf32> to vector<8x512xf32>
    %72 = arith.negf %71 : vector<8x512xf32>
    %73 = math.exp %72 : vector<8x512xf32>
    %cst_58 = arith.constant 1.000000e+00 : f32
    %74 = vector.broadcast %cst_58 : f32 to vector<8x512xf32>
    %75 = arith.addf %74, %73 : vector<8x512xf32>
    %76 = arith.divf %74, %75 : vector<8x512xf32>
    %77 = vector.extract_strided_slice %70 {offsets = [8, 0], sizes = [8, 512], strides = [1, 1]} : vector<16x512xf32> to vector<8x512xf32>
    %78 = arith.negf %77 : vector<8x512xf32>
    %79 = math.exp %78 : vector<8x512xf32>
    %cst_59 = arith.constant 1.000000e+00 : f32
    %80 = vector.broadcast %cst_59 : f32 to vector<8x512xf32>
    %81 = arith.addf %80, %79 : vector<8x512xf32>
    %82 = arith.divf %80, %81 : vector<8x512xf32>
    %83 = arith.mulf %76, %3 : vector<8x512xf32>
    %84 = arith.truncf %83 : vector<8x512xf32> to vector<8x512xbf16>
    %c0_60 = arith.constant 0 : index
    %c128_61 = arith.constant 128 : index
    %85 = vector.load %arg9[%c0_60, %c128_61] : memref<16x768xbf16, #tpu.memory_space<vmem>>, vector<8x512xbf16>
    tpu.vector_store %arg9[%c0_60, %c128_61], %84 {strides = array<i32>} : memref<16x768xbf16, #tpu.memory_space<vmem>>, vector<8x512xbf16>,
    %c0_62 = arith.constant 0 : index
    %c111_63 = arith.constant 111 : index
    %86 = vector.load %arg9[%c0_62, %c111_63] : memref<16x768xbf16, #tpu.memory_space<vmem>>, vector<8x512xbf16>
    %c0_64 = arith.constant 0 : index
    %c0_65 = arith.constant 0 : index
    %c0_66 = arith.constant 0 : index
    %87 = vector.load %arg7[%c0_64, %c0_65, %c0_66] : memref<9x1x512xbf16, #tpu.memory_space<vmem>>, vector<1x1x512xbf16>
    %88 = vector.shape_cast %87 : vector<1x1x512xbf16> to vector<1x512xbf16>
    %89 = vector.broadcast %88 : vector<1x512xbf16> to vector<8x512xbf16>
    %90 = arith.mulf %86, %89 : vector<8x512xbf16>
    %c0_67 = arith.constant 0 : index
    %c0_68 = arith.constant 0 : index
    %91 = vector.load %arg10[%c0_67, %c0_68] : memref<144x512xbf16, #tpu.memory_space<vmem>>, vector<8x512xbf16>
    tpu.vector_store %arg10[%c0_67, %c0_68], %90 {strides = array<i32>} : memref<144x512xbf16, #tpu.memory_space<vmem>>, vector<8x512xbf16>,
    %c0_69 = arith.constant 0 : index
    %c112_70 = arith.constant 112 : index
    %92 = vector.load %arg9[%c0_69, %c112_70] : memref<16x768xbf16, #tpu.memory_space<vmem>>, vector<8x512xbf16>
    %c1_71 = arith.constant 1 : index
    %c0_72 = arith.constant 0 : index
    %c0_73 = arith.constant 0 : index
    %93 = vector.load %arg7[%c1_71, %c0_72, %c0_73] : memref<9x1x512xbf16, #tpu.memory_space<vmem>>, vector<1x1x512xbf16>
    %94 = vector.shape_cast %93 : vector<1x1x512xbf16> to vector<1x512xbf16>
    %95 = vector.broadcast %94 : vector<1x512xbf16> to vector<8x512xbf16>
    %96 = arith.mulf %92, %95 : vector<8x512xbf16>
    %c16_74 = arith.constant 16 : index
    %c0_75 = arith.constant 0 : index
    %97 = vector.load %arg10[%c16_74, %c0_75] : memref<144x512xbf16, #tpu.memory_space<vmem>>, vector<8x512xbf16>
    tpu.vector_store %arg10[%c16_74, %c0_75], %96 {strides = array<i32>} : memref<144x512xbf16, #tpu.memory_space<vmem>>, vector<8x512xbf16>,
    %c0_76 = arith.constant 0 : index
    %c113_77 = arith.constant 113 : index
    %98 = vector.load %arg9[%c0_76, %c113_77] : memref<16x768xbf16, #tpu.memory_space<vmem>>, vector<8x512xbf16>
    %c2_78 = arith.constant 2 : index
    %c0_79 = arith.constant 0 : index
    %c0_80 = arith.constant 0 : index
    %99 = vector.load %arg7[%c2_78, %c0_79, %c0_80] : memref<9x1x512xbf16, #tpu.memory_space<vmem>>, vector<1x1x512xbf16>
    %100 = vector.shape_cast %99 : vector<1x1x512xbf16> to vector<1x512xbf16>
    %101 = vector.broadcast %100 : vector<1x512xbf16> to vector<8x512xbf16>
    %102 = arith.mulf %98, %101 : vector<8x512xbf16>
    %c32_81 = arith.constant 32 : index
    %c0_82 = arith.constant 0 : index
    %103 = vector.load %arg10[%c32_81, %c0_82] : memref<144x512xbf16, #tpu.memory_space<vmem>>, vector<8x512xbf16>
    tpu.vector_store %arg10[%c32_81, %c0_82], %102 {strides = array<i32>} : memref<144x512xbf16, #tpu.memory_space<vmem>>, vector<8x512xbf16>,
    %c0_83 = arith.constant 0 : index
    %c127_84 = arith.constant 127 : index
    %104 = vector.load %arg9[%c0_83, %c127_84] : memref<16x768xbf16, #tpu.memory_space<vmem>>, vector<8x512xbf16>
    %c3_85 = arith.constant 3 : index
    %c0_86 = arith.constant 0 : index
    %c0_87 = arith.constant 0 : index
    %105 = vector.load %arg7[%c3_85, %c0_86, %c0_87] : memref<9x1x512xbf16, #tpu.memory_space<vmem>>, vector<1x1x512xbf16>
    %106 = vector.shape_cast %105 : vector<1x1x512xbf16> to vector<1x512xbf16>
    %107 = vector.broadcast %106 : vector<1x512xbf16> to vector<8x512xbf16>
    %108 = arith.mulf %104, %107 : vector<8x512xbf16>
    %c48_88 = arith.constant 48 : index
    %c0_89 = arith.constant 0 : index
    %109 = vector.load %arg10[%c48_88, %c0_89] : memref<144x512xbf16, #tpu.memory_space<vmem>>, vector<8x512xbf16>
    tpu.vector_store %arg10[%c48_88, %c0_89], %108 {strides = array<i32>} : memref<144x512xbf16, #tpu.memory_space<vmem>>, vector<8x512xbf16>,
    %c0_90 = arith.constant 0 : index
    %c128_91 = arith.constant 128 : index
    %110 = vector.load %arg9[%c0_90, %c128_91] : memref<16x768xbf16, #tpu.memory_space<vmem>>, vector<8x512xbf16>
    %c4_92 = arith.constant 4 : index
    %c0_93 = arith.constant 0 : index
    %c0_94 = arith.constant 0 : index
    %111 = vector.load %arg7[%c4_92, %c0_93, %c0_94] : memref<9x1x512xbf16, #tpu.memory_space<vmem>>, vector<1x1x512xbf16>
    %112 = vector.shape_cast %111 : vector<1x1x512xbf16> to vector<1x512xbf16>
    %113 = vector.broadcast %112 : vector<1x512xbf16> to vector<8x512xbf16>
    %114 = arith.mulf %110, %113 : vector<8x512xbf16>
    %c64_95 = arith.constant 64 : index
    %c0_96 = arith.constant 0 : index
    %115 = vector.load %arg10[%c64_95, %c0_96] : memref<144x512xbf16, #tpu.memory_space<vmem>>, vector<8x512xbf16>
    tpu.vector_store %arg10[%c64_95, %c0_96], %114 {strides = array<i32>} : memref<144x512xbf16, #tpu.memory_space<vmem>>, vector<8x512xbf16>,
    %c0_97 = arith.constant 0 : index
    %c129_98 = arith.constant 129 : index
    %116 = vector.load %arg9[%c0_97, %c129_98] : memref<16x768xbf16, #tpu.memory_space<vmem>>, vector<8x512xbf16>
    %c5_99 = arith.constant 5 : index
    %c0_100 = arith.constant 0 : index
    %c0_101 = arith.constant 0 : index
    %117 = vector.load %arg7[%c5_99, %c0_100, %c0_101] : memref<9x1x512xbf16, #tpu.memory_space<vmem>>, vector<1x1x512xbf16>
    %118 = vector.shape_cast %117 : vector<1x1x512xbf16> to vector<1x512xbf16>
    %119 = vector.broadcast %118 : vector<1x512xbf16> to vector<8x512xbf16>
    %120 = arith.mulf %116, %119 : vector<8x512xbf16>
    %c80_102 = arith.constant 80 : index
    %c0_103 = arith.constant 0 : index
    %121 = vector.load %arg10[%c80_102, %c0_103] : memref<144x512xbf16, #tpu.memory_space<vmem>>, vector<8x512xbf16>
    tpu.vector_store %arg10[%c80_102, %c0_103], %120 {strides = array<i32>} : memref<144x512xbf16, #tpu.memory_space<vmem>>, vector<8x512xbf16>,
    %c0_104 = arith.constant 0 : index
    %c143_105 = arith.constant 143 : index
    %122 = vector.load %arg9[%c0_104, %c143_105] : memref<16x768xbf16, #tpu.memory_space<vmem>>, vector<8x512xbf16>
    %c6_106 = arith.constant 6 : index
    %c0_107 = arith.constant 0 : index
    %c0_108 = arith.constant 0 : index
    %123 = vector.load %arg7[%c6_106, %c0_107, %c0_108] : memref<9x1x512xbf16, #tpu.memory_space<vmem>>, vector<1x1x512xbf16>
    %124 = vector.shape_cast %123 : vector<1x1x512xbf16> to vector<1x512xbf16>
    %125 = vector.broadcast %124 : vector<1x512xbf16> to vector<8x512xbf16>
    %126 = arith.mulf %122, %125 : vector<8x512xbf16>
    %c96_109 = arith.constant 96 : index
    %c0_110 = arith.constant 0 : index
    %127 = vector.load %arg10[%c96_109, %c0_110] : memref<144x512xbf16, #tpu.memory_space<vmem>>, vector<8x512xbf16>
    tpu.vector_store %arg10[%c96_109, %c0_110], %126 {strides = array<i32>} : memref<144x512xbf16, #tpu.memory_space<vmem>>, vector<8x512xbf16>,
    %c0_111 = arith.constant 0 : index
    %c144_112 = arith.constant 144 : index
    %128 = vector.load %arg9[%c0_111, %c144_112] : memref<16x768xbf16, #tpu.memory_space<vmem>>, vector<8x512xbf16>
    %c7_113 = arith.constant 7 : index
    %c0_114 = arith.constant 0 : index
    %c0_115 = arith.constant 0 : index
    %129 = vector.load %arg7[%c7_113, %c0_114, %c0_115] : memref<9x1x512xbf16, #tpu.memory_space<vmem>>, vector<1x1x512xbf16>
    %130 = vector.shape_cast %129 : vector<1x1x512xbf16> to vector<1x512xbf16>
    %131 = vector.broadcast %130 : vector<1x512xbf16> to vector<8x512xbf16>
    %132 = arith.mulf %128, %131 : vector<8x512xbf16>
    %c112_116 = arith.constant 112 : index
    %c0_117 = arith.constant 0 : index
    %133 = vector.load %arg10[%c112_116, %c0_117] : memref<144x512xbf16, #tpu.memory_space<vmem>>, vector<8x512xbf16>
    tpu.vector_store %arg10[%c112_116, %c0_117], %132 {strides = array<i32>} : memref<144x512xbf16, #tpu.memory_space<vmem>>, vector<8x512xbf16>,
    %c0_118 = arith.constant 0 : index
    %c145_119 = arith.constant 145 : index
    %134 = vector.load %arg9[%c0_118, %c145_119] : memref<16x768xbf16, #tpu.memory_space<vmem>>, vector<8x512xbf16>
    %c8_120 = arith.constant 8 : index
    %c0_121 = arith.constant 0 : index
    %c0_122 = arith.constant 0 : index
    %135 = vector.load %arg7[%c8_120, %c0_121, %c0_122] : memref<9x1x512xbf16, #tpu.memory_space<vmem>>, vector<1x1x512xbf16>
    %136 = vector.shape_cast %135 : vector<1x1x512xbf16> to vector<1x512xbf16>
    %137 = vector.broadcast %136 : vector<1x512xbf16> to vector<8x512xbf16>
    %138 = arith.mulf %134, %137 : vector<8x512xbf16>
    %c128_123 = arith.constant 128 : index
    %c0_124 = arith.constant 0 : index
    %139 = vector.load %arg10[%c128_123, %c0_124] : memref<144x512xbf16, #tpu.memory_space<vmem>>, vector<8x512xbf16>
    tpu.vector_store %arg10[%c128_123, %c0_124], %138 {strides = array<i32>} : memref<144x512xbf16, #tpu.memory_space<vmem>>, vector<8x512xbf16>,
    %140 = vector.extract_strided_slice %66 {offsets = [16, 0], sizes = [8, 512], strides = [1, 1]} : vector<24x512xf32> to vector<8x512xf32>
    %c0_125 = arith.constant 0 : index
    %c0_126 = arith.constant 0 : index
    %141 = vector.load %arg4[%c0_125, %c0_126] : memref<8x144xbf16, #tpu.memory_space<vmem>>, vector<8x144xbf16>
    %c0_127 = arith.constant 0 : index
    %c0_128 = arith.constant 0 : index
    %142 = vector.load %arg10[%c0_127, %c0_128] : memref<144x512xbf16, #tpu.memory_space<vmem>>, vector<144x512xbf16>
    %cst_129 = arith.constant dense<0.000000e+00> : vector<8x512xf32>
    %143 = tpu.matmul %141, %142, %cst_129 {dimension_numbers = #tpu.dot_dimension_numbers<[1], [0], [0], [1], [0, 0, 1, 1], [], []>} : vector<8x144xbf16>, vector<144x512xbf16>, vector<8x512xf32> -> vector<8x512xf32>
    %144 = arith.addf %140, %143 : vector<8x512xf32>
    %c0_130 = arith.constant 0 : index
    %c0_131 = arith.constant 0 : index
    %145 = vector.load %arg6[%c0_130, %c0_131] : memref<8x1xf32, #tpu.memory_space<vmem>>, vector<8x1xf32>
    %146 = vector.broadcast %145 : vector<8x1xf32> to vector<8x512xf32>
    %147 = arith.addf %144, %146 : vector<8x512xf32>
    %148 = math.tanh %147 : vector<8x512xf32>
    %149 = arith.subf %148, %3 : vector<8x512xf32>
    %150 = arith.mulf %82, %149 : vector<8x512xf32>
    %151 = arith.addf %3, %150 : vector<8x512xf32>
    %c0_132 = arith.constant 0 : index
    %c0_133 = arith.constant 0 : index
    %152 = vector.load %arg8[%c0_132, %c0_133] : memref<8x512xf32, #tpu.memory_space<vmem>>, vector<8x512xf32>
    tpu.vector_store %arg8[%c0_132, %c0_133], %151 {strides = array<i32>} : memref<8x512xf32, #tpu.memory_space<vmem>>, vector<8x512xf32>,
    return
  }
  func.func @transform_0(%arg0: i32) -> (i32, i32) {
    %c0_i32 = arith.constant 0 : i32
    %c0_i32_0 = arith.constant 0 : i32
    return %c0_i32, %arg0 : i32, i32
  }
  func.func @transform_1(%arg0: i32) -> (i32, i32) {
    %c0_i32 = arith.constant 0 : i32
    %c0_i32_0 = arith.constant 0 : i32
    return %c0_i32, %arg0 : i32, i32
  }
  func.func @transform_2(%arg0: i32) -> (i32, i32) {
    %c0_i32 = arith.constant 0 : i32
    %c0_i32_0 = arith.constant 0 : i32
    %c0_i32_1 = arith.constant 0 : i32
    return %c0_i32, %c0_i32_0 : i32, i32
  }
  func.func @transform_3(%arg0: i32) -> (i32, i32) {
    %c0_i32 = arith.constant 0 : i32
    %c0_i32_0 = arith.constant 0 : i32
    %c0_i32_1 = arith.constant 0 : i32
    return %c0_i32, %c0_i32_0 : i32, i32
  }
  func.func @transform_4(%arg0: i32) -> (i32, i32) {
    %c0_i32 = arith.constant 0 : i32
    %c0_i32_0 = arith.constant 0 : i32
    %c0_i32_1 = arith.constant 0 : i32
    return %c0_i32, %c0_i32_0 : i32, i32
  }
  func.func @transform_5(%arg0: i32) -> (i32, i32) {
    %c0_i32 = arith.constant 0 : i32
    %c0_i32_0 = arith.constant 0 : i32
    %c0_i32_1 = arith.constant 0 : i32
    return %c0_i32, %c0_i32_0 : i32, i32
  }
  func.func @transform_6(%arg0: i32) -> (i32, i32, i32) {
    %c0_i32 = arith.constant 0 : i32
    %c0_i32_0 = arith.constant 0 : i32
    %c0_i32_1 = arith.constant 0 : i32
    %c0_i32_2 = arith.constant 0 : i32
    return %c0_i32, %c0_i32_0, %c0_i32_1 : i32, i32, i32
  }
  func.func @transform_7(%arg0: i32) -> (i32, i32) {
    %c0_i32 = arith.constant 0 : i32
    %c0_i32_0 = arith.constant 0 : i32
    return %c0_i32, %arg0 : i32, i32
  }
}

</mosaic_0001>

<llo_original>
// kernel: tpu_custom_call.1
$region0: #{tpu_custom_call.1}
  #allocation0 [shape = 'u32[]', space=smem, size = 0x4, offset = 0x4, fixed_abs, tag = 'smem constant byte address 0x4 - core index']
  #allocation1 [shape = 'u32[144,128]{1,0:T(1,128)}', space=vmem, size = 0x12000, scoped, tag = 'internal scratch']
  #allocation2 [shape = 'bf16[16,768]{1,0:T(16,128)(2,1)}', space=vmem, size = 0x6000, scoped, tag = 'scratch operand']
  #allocation3 [shape = 'bf16[144,512]{1,0:T(16,128)(2,1)}', space=vmem, size = 0x24000, scoped, tag = 'scratch operand']
  %s0 = inlined_call_operand.vmem [shape: bf16[4,512], index: 0, kind: input, shape index: {}]
  %s1 = inlined_call_operand.vmem [shape: f32[8,512], index: 1, kind: input, shape index: {}]
  %s2 = inlined_call_operand.vmem [shape: bf16[24,144], index: 2, kind: input, shape index: {}]
  %s3 = inlined_call_operand.vmem [shape: bf16[8,144], index: 3, kind: input, shape index: {}]
  %s4 = inlined_call_operand.vmem [shape: f32[16,1], index: 4, kind: input, shape index: {}]
  %s5 = inlined_call_operand.vmem [shape: f32[8,1], index: 5, kind: input, shape index: {}]
  %s6 = inlined_call_operand.vmem [shape: bf16[9,1,512], index: 6, kind: input, shape index: {}]
  %s7 = inlined_call_operand.hbm [shape: f32[8,512], index: 7, kind: output, shape index: {}]
  %s8 = sld [smem:[#allocation0]]
  $region38: #{tpu_custom_call.1} parent=0
    _
  %s10 = ssub.s32 1, %s8
  %s11 = scalar_select 0, %s10, %s8
  $region1: #{tpu_custom_call.1} parent=0
    #allocation4 [shape = 'u8[16384]{0}', space=vmem, size = 0x4000, scoped, tag = 'output window, operand 0, single buffered']
    #allocation5 [shape = 's32[1]{0}', space=sflag, size = 0x4, scoped, tag = 'scoped memory for tpu_custom_call.1']
    %12 = vsyncpa [#allocation5], 0
    // Predicated region
    $region2: #{tpu_custom_call.1} parent=1 // pred_check
      _
    $region3: #{tpu_custom_call.1} parent=1 // pred_check_branch
      %14 = sbr.rel (0) target = $region5
    $region4: #{tpu_custom_call.1} parent=1 // pred_region
      _
    $region5: #{tpu_custom_call.1} parent=1 // pred_fallthru
      _
    // Predicated region
    $region6: #{tpu_custom_call.1} parent=1 // pred_check
      _
    $region7: #{tpu_custom_call.1} parent=1 // pred_check_branch
      %16 = sbr.rel (0) target = $region9
    $region8: #{tpu_custom_call.1} parent=1 // pred_region
      _
    $region9: #{tpu_custom_call.1} parent=1 // pred_fallthru
      _
    // Predicated region
    $region10: #{tpu_custom_call.1} parent=1 // pred_check
      _
    $region11: #{tpu_custom_call.1} parent=1 // pred_check_branch
      %18 = sbr.rel (0) target = $region13
    $region12: #{tpu_custom_call.1} parent=1 // pred_region
      _
    $region13: #{tpu_custom_call.1} parent=1 // pred_fallthru
      _
    // Predicated region
    $region14: #{tpu_custom_call.1} parent=1 // pred_check
      _
    $region15: #{tpu_custom_call.1} parent=1 // pred_check_branch
      %20 = sbr.rel (0) target = $region17
    $region16: #{tpu_custom_call.1} parent=1 // pred_region
      _
    $region17: #{tpu_custom_call.1} parent=1 // pred_fallthru
      _
    // Predicated region
    $region18: #{tpu_custom_call.1} parent=1 // pred_check
      _
    $region19: #{tpu_custom_call.1} parent=1 // pred_check_branch
      %22 = sbr.rel (0) target = $region21
    $region20: #{tpu_custom_call.1} parent=1 // pred_region
      _
    $region21: #{tpu_custom_call.1} parent=1 // pred_fallthru
      _
    // Predicated region
    $region22: #{tpu_custom_call.1} parent=1 // pred_check
      _
    $region23: #{tpu_custom_call.1} parent=1 // pred_check_branch
      %24 = sbr.rel (0) target = $region25
    $region24: #{tpu_custom_call.1} parent=1 // pred_region
      _
    $region25: #{tpu_custom_call.1} parent=1 // pred_fallthru
      _
    // Predicated region
    $region26: #{tpu_custom_call.1} parent=1 // pred_check
      _
    $region27: #{tpu_custom_call.1} parent=1 // pred_check_branch
      %26 = sbr.rel (0) target = $region29
    $region28: #{tpu_custom_call.1} parent=1 // pred_region
      _
    $region29: #{tpu_custom_call.1} parent=1 // pred_fallthru
      _
    %28 = vst [vmem:[#allocation2] sm:$0xff] 0
    %29 = vst [vmem:[#allocation2 + $0x28] sm:$0xff] 0
    %v30 = vld [vmem:[%s1] sm:$0xff]
    %v31 = vld [vmem:[%s1 + $0x8] sm:$0xff]
    %v32 = vld [vmem:[%s1 + $0x10] sm:$0xff]
    %v33 = vld [vmem:[%s1 + $0x18] sm:$0xff]
    %v34 = vpack.c.bf16 %v30, %v30
    %v35 = vpack.c.bf16 %v31, %v31
    %v36 = vpack.c.bf16 %v32, %v32
    %v37 = vpack.c.bf16 %v33, %v33
    %38 = vst [vmem:[#allocation2 + $0x8] sm:$0xf] %v34
    %39 = vst [vmem:[#allocation2 + $0x10] sm:$0xf] %v35
    %40 = vst [vmem:[#allocation2 + $0x18] sm:$0xf] %v36
    %41 = vst [vmem:[#allocation2 + $0x20] sm:$0xf] %v37
    %v42 = vld [vmem:[%s0] sm:$0xff]
    %v44 = vcombine.high %v42, %v42
    %v46 = vunpack.c.l.s4 1983009808
    %v47 = vunpack.c.0.s8 %v46
    %v48 = vlaneseq
    %v49 = vshrl.u32 %v48, 7
    %v50 = vsub.s32 %v47, %v49
    %v51 = vrot.slane %v42, %v50
    %v53 = vunpack.c.l.s4 1983009808
    %v54 = vunpack.c.0.s8 %v53
    %v55 = vlaneseq
    %v56 = vshrl.u32 %v55, 7
    %v57 = vsub.s32 %v54, %v56
    %v58 = vrot.slane %v44, %v57
    %v59 = vcombine.high %v51, %v51
    %v60 = vcombine.high %v58, %v58
    %vm61 = vcmask 1041408
    %v64 = vsel %vm61, %v51, 0
    %v66 = vsel %vm61, %v59, 0
    %v68 = vsel %vm61, %v58, 0
    %v70 = vsel %vm61, %v60, 0
    %v75 = vrot.slane %v64, 4
    %v76 = vrot.slane %v66, 4
    %v77 = vrot.slane %v68, 4
    %v78 = vrot.slane %v70, 4
    %83 = vst [vmem:[#allocation2 + $0x8] sm:$0xf0] %v75
    %84 = vst [vmem:[#allocation2 + $0x10] sm:$0xf0] %v76
    %85 = vst [vmem:[#allocation2 + $0x18] sm:$0xf0] %v77
    %86 = vst [vmem:[#allocation2 + $0x20] sm:$0xf0] %v78
    %v87 = vld [vmem:[#allocation2] sm:$0xff]
    %v88 = vld [vmem:[#allocation2 + $0x8] sm:$0xff]
    %v89 = vld [vmem:[#allocation2 + $0x10] sm:$0xff]
    %v90 = vld [vmem:[#allocation2 + $0x18] sm:$0xff]
    %v91 = vld [vmem:[#allocation2 + $0x20] sm:$0xff]
    %v92 = vld [vmem:[%s6] sm:$0xf]
    %v95 = vunpack.c.l.s4 1966171168
    %v96 = vunpack.c.0.s8 %v95
    %v97 = vlaneseq
    %v98 = vshrl.u32 %v97, 7
    %v99 = vsub.s32 %v96, %v98
    %v100 = vrot.slane %v92, %v99
    %v101 = vcombine.high %v100, %v100
    %v103 = vunpack.c.l.s4 1966171168
    %v104 = vunpack.c.0.s8 %v103
    %v105 = vlaneseq
    %v106 = vshrl.u32 %v105, 7
    %v107 = vsub.s32 %v104, %v106
    %v108 = vrot.slane %v100, %v107
    %v110 = vunpack.c.l.s4 1966171168
    %v111 = vunpack.c.0.s8 %v110
    %v112 = vlaneseq
    %v113 = vshrl.u32 %v112, 7
    %v114 = vsub.s32 %v111, %v113
    %v115 = vrot.slane %v101, %v114
    %v116 = vcombine.high %v108, %v108
    %v117 = vcombine.high %v115, %v115
    %v119 = vpack.i.b16 %v108, %v108
    %v121 = vlaneseq
    %v122 = vshrl.u32 %v121, 7
    %v123 = vsub.s32 0, %v122
    %v124 = vrot.slane %v119, %v123
    %v126 = vpack.i.b16 %v115, %v115
    %v128 = vlaneseq
    %v129 = vshrl.u32 %v128, 7
    %v130 = vsub.s32 0, %v129
    %v131 = vrot.slane %v126, %v130
    %v133 = vpack.i.b16 %v116, %v116
    %v135 = vlaneseq
    %v136 = vshrl.u32 %v135, 7
    %v137 = vsub.s32 0, %v136
    %v138 = vrot.slane %v133, %v137
    %v140 = vpack.i.b16 %v117, %v117
    %v142 = vlaneseq
    %v143 = vshrl.u32 %v142, 7
    %v144 = vsub.s32 0, %v143
    %v145 = vrot.slane %v140, %v144
    %150 = vrot.lane.b32.xlu0 %v124, 111
    %v151 = vpop.permute.xlu0 %150
    %152 = vrot.lane.b32.xlu0 %v131, 111
    %v153 = vpop.permute.xlu0 %152
    %154 = vrot.lane.b32.xlu0 %v138, 111
    %v155 = vpop.permute.xlu0 %154
    %156 = vrot.lane.b32.xlu0 %v145, 111
    %v157 = vpop.permute.xlu0 %156
    %vm158 = vcmask 908288
    %v159 = vsel %vm158, %v151, %v153
    %v160 = vsel %vm158, %v153, %v155
    %v161 = vsel %vm158, %v155, %v157
    %v167 = vmul.bf16 %v87, %v151
    %v168 = vmul.bf16 %v88, %v159
    %v169 = vmul.bf16 %v89, %v160
    %v170 = vmul.bf16 %v90, %v161
    %v171 = vmul.bf16 %v91, %v157
    %177 = vrot.lane.b32.xlu0 %v167, 17
    %v178 = vpop.permute.xlu0 %177
    %179 = vrot.lane.b32.xlu0 %v168, 17
    %v180 = vpop.permute.xlu0 %179
    %181 = vrot.lane.b32.xlu0 %v169, 17
    %v182 = vpop.permute.xlu0 %181
    %183 = vrot.lane.b32.xlu0 %v170, 17
    %v184 = vpop.permute.xlu0 %183
    %185 = vrot.lane.b32.xlu0 %v171, 17
    %v186 = vpop.permute.xlu0 %185
    %vm187 = vcmask 138240
    %v188 = vsel %vm187, %v178, %v180
    %v189 = vsel %vm187, %v180, %v182
    %v190 = vsel %vm187, %v182, %v184
    %v191 = vsel %vm187, %v184, %v186
    %196 = vst [vmem:[#allocation3] sm:$0xff] %v188
    %197 = vst [vmem:[#allocation3 + $0x8] sm:$0xff] %v189
    %198 = vst [vmem:[#allocation3 + $0x10] sm:$0xff] %v190
    %199 = vst [vmem:[#allocation3 + $0x18] sm:$0xff] %v191
    %v200 = vld [vmem:[#allocation2] sm:$0xff]
    %v201 = vld [vmem:[#allocation2 + $0x8] sm:$0xff]
    %v202 = vld [vmem:[#allocation2 + $0x10] sm:$0xff]
    %v203 = vld [vmem:[#allocation2 + $0x18] sm:$0xff]
    %v204 = vld [vmem:[#allocation2 + $0x20] sm:$0xff]
    %s205 = scalar_lea.vmem %s6, 4
    %v206 = vld [vmem:[%s205] sm:$0xf]
    %v209 = vunpack.c.l.s4 1966171168
    %v210 = vunpack.c.0.s8 %v209
    %v211 = vlaneseq
    %v212 = vshrl.u32 %v211, 7
    %v213 = vsub.s32 %v210, %v212
    %v214 = vrot.slane %v206, %v213
    %v215 = vcombine.high %v214, %v214
    %v217 = vunpack.c.l.s4 1966171168
    %v218 = vunpack.c.0.s8 %v217
    %v219 = vlaneseq
    %v220 = vshrl.u32 %v219, 7
    %v221 = vsub.s32 %v218, %v220
    %v222 = vrot.slane %v214, %v221
    %v224 = vunpack.c.l.s4 1966171168
    %v225 = vunpack.c.0.s8 %v224
    %v226 = vlaneseq
    %v227 = vshrl.u32 %v226, 7
    %v228 = vsub.s32 %v225, %v227
    %v229 = vrot.slane %v215, %v228
    %v230 = vcombine.high %v222, %v222
    %v231 = vcombine.high %v229, %v229
    %v233 = vpack.i.b16 %v222, %v222
    %v235 = vlaneseq
    %v236 = vshrl.u32 %v235, 7
    %v237 = vsub.s32 0, %v236
    %v238 = vrot.slane %v233, %v237
    %v240 = vpack.i.b16 %v229, %v229
    %v242 = vlaneseq
    %v243 = vshrl.u32 %v242, 7
    %v244 = vsub.s32 0, %v243
    %v245 = vrot.slane %v240, %v244
    %v247 = vpack.i.b16 %v230, %v230
    %v249 = vlaneseq
    %v250 = vshrl.u32 %v249, 7
    %v251 = vsub.s32 0, %v250
    %v252 = vrot.slane %v247, %v251
    %v254 = vpack.i.b16 %v231, %v231
    %v256 = vlaneseq
    %v257 = vshrl.u32 %v256, 7
    %v258 = vsub.s32 0, %v257
    %v259 = vrot.slane %v254, %v258
    %264 = vrot.lane.b32.xlu0 %v238, 112
    %v265 = vpop.permute.xlu0 %264
    %266 = vrot.lane.b32.xlu0 %v245, 112
    %v267 = vpop.permute.xlu0 %266
    %268 = vrot.lane.b32.xlu0 %v252, 112
    %v269 = vpop.permute.xlu0 %268
    %270 = vrot.lane.b32.xlu0 %v259, 112
    %v271 = vpop.permute.xlu0 %270
    %vm272 = vcmask 916480
    %v273 = vsel %vm272, %v265, %v267
    %v274 = vsel %vm272, %v267, %v269
    %v275 = vsel %vm272, %v269, %v271
    %v281 = vmul.bf16 %v200, %v265
    %v282 = vmul.bf16 %v201, %v273
    %v283 = vmul.bf16 %v202, %v274
    %v284 = vmul.bf16 %v203, %v275
    %v285 = vmul.bf16 %v204, %v271
    %291 = vrot.lane.b32.xlu0 %v281, 16
    %v292 = vpop.permute.xlu0 %291
    %293 = vrot.lane.b32.xlu0 %v282, 16
    %v294 = vpop.permute.xlu0 %293
    %295 = vrot.lane.b32.xlu0 %v283, 16
    %v296 = vpop.permute.xlu0 %295
    %297 = vrot.lane.b32.xlu0 %v284, 16
    %v298 = vpop.permute.xlu0 %297
    %299 = vrot.lane.b32.xlu0 %v285, 16
    %v300 = vpop.permute.xlu0 %299
    %vm301 = vcmask 130048
    %v302 = vsel %vm301, %v292, %v294
    %v303 = vsel %vm301, %v294, %v296
    %v304 = vsel %vm301, %v296, %v298
    %v305 = vsel %vm301, %v298, %v300
    %310 = vst [vmem:[#allocation3 + $0x20] sm:$0xff] %v302
    %311 = vst [vmem:[#allocation3 + $0x28] sm:$0xff] %v303
    %312 = vst [vmem:[#allocation3 + $0x30] sm:$0xff] %v304
    %313 = vst [vmem:[#allocation3 + $0x38] sm:$0xff] %v305
    %v314 = vld [vmem:[#allocation2] sm:$0xff]
    %v315 = vld [vmem:[#allocation2 + $0x8] sm:$0xff]
    %v316 = vld [vmem:[#allocation2 + $0x10] sm:$0xff]
    %v317 = vld [vmem:[#allocation2 + $0x18] sm:$0xff]
    %v318 = vld [vmem:[#allocation2 + $0x20] sm:$0xff]
    %s319 = scalar_lea.vmem %s6, 8
    %v320 = vld [vmem:[%s319] sm:$0xf]
    %v323 = vunpack.c.l.s4 1966171168
    %v324 = vunpack.c.0.s8 %v323
    %v325 = vlaneseq
    %v326 = vshrl.u32 %v325, 7
    %v327 = vsub.s32 %v324, %v326
    %v328 = vrot.slane %v320, %v327
    %v329 = vcombine.high %v328, %v328
    %v331 = vunpack.c.l.s4 1966171168
    %v332 = vunpack.c.0.s8 %v331
    %v333 = vlaneseq
    %v334 = vshrl.u32 %v333, 7
    %v335 = vsub.s32 %v332, %v334
    %v336 = vrot.slane %v328, %v335
    %v338 = vunpack.c.l.s4 1966171168
    %v339 = vunpack.c.0.s8 %v338
    %v340 = vlaneseq
    %v341 = vshrl.u32 %v340, 7
    %v342 = vsub.s32 %v339, %v341
    %v343 = vrot.slane %v329, %v342
    %v344 = vcombine.high %v336, %v336
    %v345 = vcombine.high %v343, %v343
    %v347 = vpack.i.b16 %v336, %v336
    %v349 = vlaneseq
    %v350 = vshrl.u32 %v349, 7
    %v351 = vsub.s32 0, %v350
    %v352 = vrot.slane %v347, %v351
    %v354 = vpack.i.b16 %v343, %v343
    %v356 = vlaneseq
    %v357 = vshrl.u32 %v356, 7
    %v358 = vsub.s32 0, %v357
    %v359 = vrot.slane %v354, %v358
    %v361 = vpack.i.b16 %v344, %v344
    %v363 = vlaneseq
    %v364 = vshrl.u32 %v363, 7
    %v365 = vsub.s32 0, %v364
    %v366 = vrot.slane %v361, %v365
    %v368 = vpack.i.b16 %v345, %v345
    %v370 = vlaneseq
    %v371 = vshrl.u32 %v370, 7
    %v372 = vsub.s32 0, %v371
    %v373 = vrot.slane %v368, %v372
    %378 = vrot.lane.b32.xlu0 %v352, 113
    %v379 = vpop.permute.xlu0 %378
    %380 = vrot.lane.b32.xlu0 %v359, 113
    %v381 = vpop.permute.xlu0 %380
    %382 = vrot.lane.b32.xlu0 %v366, 113
    %v383 = vpop.permute.xlu0 %382
    %384 = vrot.lane.b32.xlu0 %v373, 113
    %v385 = vpop.permute.xlu0 %384
    %vm386 = vcmask 924672
    %v387 = vsel %vm386, %v379, %v381
    %v388 = vsel %vm386, %v381, %v383
    %v389 = vsel %vm386, %v383, %v385
    %v395 = vmul.bf16 %v314, %v379
    %v396 = vmul.bf16 %v315, %v387
    %v397 = vmul.bf16 %v316, %v388
    %v398 = vmul.bf16 %v317, %v389
    %v399 = vmul.bf16 %v318, %v385
    %405 = vrot.lane.b32.xlu0 %v395, 15
    %v406 = vpop.permute.xlu0 %405
    %407 = vrot.lane.b32.xlu0 %v396, 15
    %v408 = vpop.permute.xlu0 %407
    %409 = vrot.lane.b32.xlu0 %v397, 15
    %v410 = vpop.permute.xlu0 %409
    %411 = vrot.lane.b32.xlu0 %v398, 15
    %v412 = vpop.permute.xlu0 %411
    %413 = vrot.lane.b32.xlu0 %v399, 15
    %v414 = vpop.permute.xlu0 %413
    %vm415 = vcmask 121856
    %v416 = vsel %vm415, %v406, %v408
    %v417 = vsel %vm415, %v408, %v410
    %v418 = vsel %vm415, %v410, %v412
    %v419 = vsel %vm415, %v412, %v414
    %424 = vst [vmem:[#allocation3 + $0x40] sm:$0xff] %v416
    %425 = vst [vmem:[#allocation3 + $0x48] sm:$0xff] %v417
    %426 = vst [vmem:[#allocation3 + $0x50] sm:$0xff] %v418
    %427 = vst [vmem:[#allocation3 + $0x58] sm:$0xff] %v419
    %v428 = vld [vmem:[#allocation2] sm:$0xff]
    %v429 = vld [vmem:[#allocation2 + $0x8] sm:$0xff]
    %v430 = vld [vmem:[#allocation2 + $0x10] sm:$0xff]
    %v431 = vld [vmem:[#allocation2 + $0x18] sm:$0xff]
    %v432 = vld [vmem:[#allocation2 + $0x20] sm:$0xff]
    %s433 = scalar_lea.vmem %s6, 12
    %v434 = vld [vmem:[%s433] sm:$0xf]
    %v437 = vunpack.c.l.s4 1966171168
    %v438 = vunpack.c.0.s8 %v437
    %v439 = vlaneseq
    %v440 = vshrl.u32 %v439, 7
    %v441 = vsub.s32 %v438, %v440
    %v442 = vrot.slane %v434, %v441
    %v443 = vcombine.high %v442, %v442
    %v445 = vunpack.c.l.s4 1966171168
    %v446 = vunpack.c.0.s8 %v445
    %v447 = vlaneseq
    %v448 = vshrl.u32 %v447, 7
    %v449 = vsub.s32 %v446, %v448
    %v450 = vrot.slane %v442, %v449
    %v452 = vunpack.c.l.s4 1966171168
    %v453 = vunpack.c.0.s8 %v452
    %v454 = vlaneseq
    %v455 = vshrl.u32 %v454, 7
    %v456 = vsub.s32 %v453, %v455
    %v457 = vrot.slane %v443, %v456
    %v458 = vcombine.high %v450, %v450
    %v459 = vcombine.high %v457, %v457
    %v461 = vpack.i.b16 %v450, %v450
    %v463 = vlaneseq
    %v464 = vshrl.u32 %v463, 7
    %v465 = vsub.s32 0, %v464
    %v466 = vrot.slane %v461, %v465
    %v468 = vpack.i.b16 %v457, %v457
    %v470 = vlaneseq
    %v471 = vshrl.u32 %v470, 7
    %v472 = vsub.s32 0, %v471
    %v473 = vrot.slane %v468, %v472
    %v475 = vpack.i.b16 %v458, %v458
    %v477 = vlaneseq
    %v478 = vshrl.u32 %v477, 7
    %v479 = vsub.s32 0, %v478
    %v480 = vrot.slane %v475, %v479
    %v482 = vpack.i.b16 %v459, %v459
    %v484 = vlaneseq
    %v485 = vshrl.u32 %v484, 7
    %v486 = vsub.s32 0, %v485
    %v487 = vrot.slane %v482, %v486
    %492 = vrot.lane.b32.xlu0 %v466, 127
    %v493 = vpop.permute.xlu0 %492
    %494 = vrot.lane.b32.xlu0 %v473, 127
    %v495 = vpop.permute.xlu0 %494
    %496 = vrot.lane.b32.xlu0 %v480, 127
    %v497 = vpop.permute.xlu0 %496
    %498 = vrot.lane.b32.xlu0 %v487, 127
    %v499 = vpop.permute.xlu0 %498
    %vm500 = vcmask 1039360
    %v501 = vsel %vm500, %v493, %v495
    %v502 = vsel %vm500, %v495, %v497
    %v503 = vsel %vm500, %v497, %v499
    %v509 = vmul.bf16 %v428, %v493
    %v510 = vmul.bf16 %v429, %v501
    %v511 = vmul.bf16 %v430, %v502
    %v512 = vmul.bf16 %v431, %v503
    %v513 = vmul.bf16 %v432, %v499
    %519 = vrot.lane.b32.xlu0 %v509, 1
    %v520 = vpop.permute.xlu0 %519
    %521 = vrot.lane.b32.xlu0 %v510, 1
    %v522 = vpop.permute.xlu0 %521
    %523 = vrot.lane.b32.xlu0 %v511, 1
    %v524 = vpop.permute.xlu0 %523
    %525 = vrot.lane.b32.xlu0 %v512, 1
    %v526 = vpop.permute.xlu0 %525
    %527 = vrot.lane.b32.xlu0 %v513, 1
    %v528 = vpop.permute.xlu0 %527
    %vm529 = vcmask 7168
    %v530 = vsel %vm529, %v520, %v522
    %v531 = vsel %vm529, %v522, %v524
    %v532 = vsel %vm529, %v524, %v526
    %v533 = vsel %vm529, %v526, %v528
    %538 = vst [vmem:[#allocation3 + $0x60] sm:$0xff] %v530
    %539 = vst [vmem:[#allocation3 + $0x68] sm:$0xff] %v531
    %540 = vst [vmem:[#allocation3 + $0x70] sm:$0xff] %v532
    %541 = vst [vmem:[#allocation3 + $0x78] sm:$0xff] %v533
    %v542 = vld [vmem:[#allocation2 + $0x8] sm:$0xff]
    %v543 = vld [vmem:[#allocation2 + $0x10] sm:$0xff]
    %v544 = vld [vmem:[#allocation2 + $0x18] sm:$0xff]
    %v545 = vld [vmem:[#allocation2 + $0x20] sm:$0xff]
    %s546 = scalar_lea.vmem %s6, 16
    %v547 = vld [vmem:[%s546] sm:$0xf]
    %v550 = vunpack.c.l.s4 1966171168
    %v551 = vunpack.c.0.s8 %v550
    %v552 = vlaneseq
    %v553 = vshrl.u32 %v552, 7
    %v554 = vsub.s32 %v551, %v553
    %v555 = vrot.slane %v547, %v554
    %v556 = vcombine.high %v555, %v555
    %v558 = vunpack.c.l.s4 1966171168
    %v559 = vunpack.c.0.s8 %v558
    %v560 = vlaneseq
    %v561 = vshrl.u32 %v560, 7
    %v562 = vsub.s32 %v559, %v561
    %v563 = vrot.slane %v555, %v562
    %v565 = vunpack.c.l.s4 1966171168
    %v566 = vunpack.c.0.s8 %v565
    %v567 = vlaneseq
    %v568 = vshrl.u32 %v567, 7
    %v569 = vsub.s32 %v566, %v568
    %v570 = vrot.slane %v556, %v569
    %v571 = vcombine.high %v563, %v563
    %v572 = vcombine.high %v570, %v570
    %v574 = vpack.i.b16 %v563, %v563
    %v576 = vlaneseq
    %v577 = vshrl.u32 %v576, 7
    %v578 = vsub.s32 0, %v577
    %v579 = vrot.slane %v574, %v578
    %v581 = vpack.i.b16 %v570, %v570
    %v583 = vlaneseq
    %v584 = vshrl.u32 %v583, 7
    %v585 = vsub.s32 0, %v584
    %v586 = vrot.slane %v581, %v585
    %v588 = vpack.i.b16 %v571, %v571
    %v590 = vlaneseq
    %v591 = vshrl.u32 %v590, 7
    %v592 = vsub.s32 0, %v591
    %v593 = vrot.slane %v588, %v592
    %v595 = vpack.i.b16 %v572, %v572
    %v597 = vlaneseq
    %v598 = vshrl.u32 %v597, 7
    %v599 = vsub.s32 0, %v598
    %v600 = vrot.slane %v595, %v599
    %v601 = vmul.bf16 %v542, %v579
    %v602 = vmul.bf16 %v543, %v586
    %v603 = vmul.bf16 %v544, %v593
    %v604 = vmul.bf16 %v545, %v600
    %605 = vst [vmem:[#allocation3 + $0x80] sm:$0xff] %v601
    %606 = vst [vmem:[#allocation3 + $0x88] sm:$0xff] %v602
    %607 = vst [vmem:[#allocation3 + $0x90] sm:$0xff] %v603
    %608 = vst [vmem:[#allocation3 + $0x98] sm:$0xff] %v604
    %v609 = vld [vmem:[#allocation2 + $0x8] sm:$0xff]
    %v610 = vld [vmem:[#allocation2 + $0x10] sm:$0xff]
    %v611 = vld [vmem:[#allocation2 + $0x18] sm:$0xff]
    %v612 = vld [vmem:[#allocation2 + $0x20] sm:$0xff]
    %v613 = vld [vmem:[#allocation2 + $0x28] sm:$0xff]
    %s614 = scalar_lea.vmem %s6, 20
    %v615 = vld [vmem:[%s614] sm:$0xf]
    %v618 = vunpack.c.l.s4 1966171168
    %v619 = vunpack.c.0.s8 %v618
    %v620 = vlaneseq
    %v621 = vshrl.u32 %v620, 7
    %v622 = vsub.s32 %v619, %v621
    %v623 = vrot.slane %v615, %v622
    %v624 = vcombine.high %v623, %v623
    %v626 = vunpack.c.l.s4 1966171168
    %v627 = vunpack.c.0.s8 %v626
    %v628 = vlaneseq
    %v629 = vshrl.u32 %v628, 7
    %v630 = vsub.s32 %v627, %v629
    %v631 = vrot.slane %v623, %v630
    %v633 = vunpack.c.l.s4 1966171168
    %v634 = vunpack.c.0.s8 %v633
    %v635 = vlaneseq
    %v636 = vshrl.u32 %v635, 7
    %v637 = vsub.s32 %v634, %v636
    %v638 = vrot.slane %v624, %v637
    %v639 = vcombine.high %v631, %v631
    %v640 = vcombine.high %v638, %v638
    %v642 = vpack.i.b16 %v631, %v631
    %v644 = vlaneseq
    %v645 = vshrl.u32 %v644, 7
    %v646 = vsub.s32 0, %v645
    %v647 = vrot.slane %v642, %v646
    %v649 = vpack.i.b16 %v638, %v638
    %v651 = vlaneseq
    %v652 = vshrl.u32 %v651, 7
    %v653 = vsub.s32 0, %v652
    %v654 = vrot.slane %v649, %v653
    %v656 = vpack.i.b16 %v639, %v639
    %v658 = vlaneseq
    %v659 = vshrl.u32 %v658, 7
    %v660 = vsub.s32 0, %v659
    %v661 = vrot.slane %v656, %v660
    %v663 = vpack.i.b16 %v640, %v640
    %v665 = vlaneseq
    %v666 = vshrl.u32 %v665, 7
    %v667 = vsub.s32 0, %v666
    %v668 = vrot.slane %v663, %v667
    %673 = vrot.lane.b32.xlu0 %v647, 1
    %v674 = vpop.permute.xlu0 %673
    %675 = vrot.lane.b32.xlu0 %v654, 1
    %v676 = vpop.permute.xlu0 %675
    %677 = vrot.lane.b32.xlu0 %v661, 1
    %v678 = vpop.permute.xlu0 %677
    %679 = vrot.lane.b32.xlu0 %v668, 1
    %v680 = vpop.permute.xlu0 %679
    %v681 = vsel %vm529, %v674, %v676
    %v682 = vsel %vm529, %v676, %v678
    %v683 = vsel %vm529, %v678, %v680
    %v689 = vmul.bf16 %v609, %v674
    %v690 = vmul.bf16 %v610, %v681
    %v691 = vmul.bf16 %v611, %v682
    %v692 = vmul.bf16 %v612, %v683
    %v693 = vmul.bf16 %v613, %v680
    %699 = vrot.lane.b32.xlu0 %v689, 127
    %v700 = vpop.permute.xlu0 %699
    %701 = vrot.lane.b32.xlu0 %v690, 127
    %v702 = vpop.permute.xlu0 %701
    %703 = vrot.lane.b32.xlu0 %v691, 127
    %v704 = vpop.permute.xlu0 %703
    %705 = vrot.lane.b32.xlu0 %v692, 127
    %v706 = vpop.permute.xlu0 %705
    %707 = vrot.lane.b32.xlu0 %v693, 127
    %v708 = vpop.permute.xlu0 %707
    %v709 = vsel %vm500, %v700, %v702
    %v710 = vsel %vm500, %v702, %v704
    %v711 = vsel %vm500, %v704, %v706
    %v712 = vsel %vm500, %v706, %v708
    %717 = vst [vmem:[#allocation3 + $0xa0] sm:$0xff] %v709
    %718 = vst [vmem:[#allocation3 + $0xa8] sm:$0xff] %v710
    %719 = vst [vmem:[#allocation3 + $0xb0] sm:$0xff] %v711
    %720 = vst [vmem:[#allocation3 + $0xb8] sm:$0xff] %v712
    %v721 = vld [vmem:[#allocation2 + $0x8] sm:$0xff]
    %v722 = vld [vmem:[#allocation2 + $0x10] sm:$0xff]
    %v723 = vld [vmem:[#allocation2 + $0x18] sm:$0xff]
    %v724 = vld [vmem:[#allocation2 + $0x20] sm:$0xff]
    %v725 = vld [vmem:[#allocation2 + $0x28] sm:$0xff]
    %s726 = scalar_lea.vmem %s6, 24
    %v727 = vld [vmem:[%s726] sm:$0xf]
    %v730 = vunpack.c.l.s4 1966171168
    %v731 = vunpack.c.0.s8 %v730
    %v732 = vlaneseq
    %v733 = vshrl.u32 %v732, 7
    %v734 = vsub.s32 %v731, %v733
    %v735 = vrot.slane %v727, %v734
    %v736 = vcombine.high %v735, %v735
    %v738 = vunpack.c.l.s4 1966171168
    %v739 = vunpack.c.0.s8 %v738
    %v740 = vlaneseq
    %v741 = vshrl.u32 %v740, 7
    %v742 = vsub.s32 %v739, %v741
    %v743 = vrot.slane %v735, %v742
    %v745 = vunpack.c.l.s4 1966171168
    %v746 = vunpack.c.0.s8 %v745
    %v747 = vlaneseq
    %v748 = vshrl.u32 %v747, 7
    %v749 = vsub.s32 %v746, %v748
    %v750 = vrot.slane %v736, %v749
    %v751 = vcombine.high %v743, %v743
    %v752 = vcombine.high %v750, %v750
    %v754 = vpack.i.b16 %v743, %v743
    %v756 = vlaneseq
    %v757 = vshrl.u32 %v756, 7
    %v758 = vsub.s32 0, %v757
    %v759 = vrot.slane %v754, %v758
    %v761 = vpack.i.b16 %v750, %v750
    %v763 = vlaneseq
    %v764 = vshrl.u32 %v763, 7
    %v765 = vsub.s32 0, %v764
    %v766 = vrot.slane %v761, %v765
    %v768 = vpack.i.b16 %v751, %v751
    %v770 = vlaneseq
    %v771 = vshrl.u32 %v770, 7
    %v772 = vsub.s32 0, %v771
    %v773 = vrot.slane %v768, %v772
    %v775 = vpack.i.b16 %v752, %v752
    %v777 = vlaneseq
    %v778 = vshrl.u32 %v777, 7
    %v779 = vsub.s32 0, %v778
    %v780 = vrot.slane %v775, %v779
    %785 = vrot.lane.b32.xlu0 %v759, 15
    %v786 = vpop.permute.xlu0 %785
    %787 = vrot.lane.b32.xlu0 %v766, 15
    %v788 = vpop.permute.xlu0 %787
    %789 = vrot.lane.b32.xlu0 %v773, 15
    %v790 = vpop.permute.xlu0 %789
    %791 = vrot.lane.b32.xlu0 %v780, 15
    %v792 = vpop.permute.xlu0 %791
    %v793 = vsel %vm415, %v786, %v788
    %v794 = vsel %vm415, %v788, %v790
    %v795 = vsel %vm415, %v790, %v792
    %v801 = vmul.bf16 %v721, %v786
    %v802 = vmul.bf16 %v722, %v793
    %v803 = vmul.bf16 %v723, %v794
    %v804 = vmul.bf16 %v724, %v795
    %v805 = vmul.bf16 %v725, %v792
    %811 = vrot.lane.b32.xlu0 %v801, 113
    %v812 = vpop.permute.xlu0 %811
    %813 = vrot.lane.b32.xlu0 %v802, 113
    %v814 = vpop.permute.xlu0 %813
    %815 = vrot.lane.b32.xlu0 %v803, 113
    %v816 = vpop.permute.xlu0 %815
    %817 = vrot.lane.b32.xlu0 %v804, 113
    %v818 = vpop.permute.xlu0 %817
    %819 = vrot.lane.b32.xlu0 %v805, 113
    %v820 = vpop.permute.xlu0 %819
    %v821 = vsel %vm386, %v812, %v814
    %v822 = vsel %vm386, %v814, %v816
    %v823 = vsel %vm386, %v816, %v818
    %v824 = vsel %vm386, %v818, %v820
    %829 = vst [vmem:[#allocation3 + $0xc0] sm:$0xff] %v821
    %830 = vst [vmem:[#allocation3 + $0xc8] sm:$0xff] %v822
    %831 = vst [vmem:[#allocation3 + $0xd0] sm:$0xff] %v823
    %832 = vst [vmem:[#allocation3 + $0xd8] sm:$0xff] %v824
    %v833 = vld [vmem:[#allocation2 + $0x8] sm:$0xff]
    %v834 = vld [vmem:[#allocation2 + $0x10] sm:$0xff]
    %v835 = vld [vmem:[#allocation2 + $0x18] sm:$0xff]
    %v836 = vld [vmem:[#allocation2 + $0x20] sm:$0xff]
    %v837 = vld [vmem:[#allocation2 + $0x28] sm:$0xff]
    %s838 = scalar_lea.vmem %s6, 28
    %v839 = vld [vmem:[%s838] sm:$0xf]
    %v842 = vunpack.c.l.s4 1966171168
    %v843 = vunpack.c.0.s8 %v842
    %v844 = vlaneseq
    %v845 = vshrl.u32 %v844, 7
    %v846 = vsub.s32 %v843, %v845
    %v847 = vrot.slane %v839, %v846
    %v848 = vcombine.high %v847, %v847
    %v850 = vunpack.c.l.s4 1966171168
    %v851 = vunpack.c.0.s8 %v850
    %v852 = vlaneseq
    %v853 = vshrl.u32 %v852, 7
    %v854 = vsub.s32 %v851, %v853
    %v855 = vrot.slane %v847, %v854
    %v857 = vunpack.c.l.s4 1966171168
    %v858 = vunpack.c.0.s8 %v857
    %v859 = vlaneseq
    %v860 = vshrl.u32 %v859, 7
    %v861 = vsub.s32 %v858, %v860
    %v862 = vrot.slane %v848, %v861
    %v863 = vcombine.high %v855, %v855
    %v864 = vcombine.high %v862, %v862
    %v866 = vpack.i.b16 %v855, %v855
    %v868 = vlaneseq
    %v869 = vshrl.u32 %v868, 7
    %v870 = vsub.s32 0, %v869
    %v871 = vrot.slane %v866, %v870
    %v873 = vpack.i.b16 %v862, %v862
    %v875 = vlaneseq
    %v876 = vshrl.u32 %v875, 7
    %v877 = vsub.s32 0, %v876
    %v878 = vrot.slane %v873, %v877
    %v880 = vpack.i.b16 %v863, %v863
    %v882 = vlaneseq
    %v883 = vshrl.u32 %v882, 7
    %v884 = vsub.s32 0, %v883
    %v885 = vrot.slane %v880, %v884
    %v887 = vpack.i.b16 %v864, %v864
    %v889 = vlaneseq
    %v890 = vshrl.u32 %v889, 7
    %v891 = vsub.s32 0, %v890
    %v892 = vrot.slane %v887, %v891
    %897 = vrot.lane.b32.xlu0 %v871, 16
    %v898 = vpop.permute.xlu0 %897
    %899 = vrot.lane.b32.xlu0 %v878, 16
    %v900 = vpop.permute.xlu0 %899
    %901 = vrot.lane.b32.xlu0 %v885, 16
    %v902 = vpop.permute.xlu0 %901
    %903 = vrot.lane.b32.xlu0 %v892, 16
    %v904 = vpop.permute.xlu0 %903
    %v905 = vsel %vm301, %v898, %v900
    %v906 = vsel %vm301, %v900, %v902
    %v907 = vsel %vm301, %v902, %v904
    %v913 = vmul.bf16 %v833, %v898
    %v914 = vmul.bf16 %v834, %v905
    %v915 = vmul.bf16 %v835, %v906
    %v916 = vmul.bf16 %v836, %v907
    %v917 = vmul.bf16 %v837, %v904
    %923 = vrot.lane.b32.xlu0 %v913, 112
    %v924 = vpop.permute.xlu0 %923
    %925 = vrot.lane.b32.xlu0 %v914, 112
    %v926 = vpop.permute.xlu0 %925
    %927 = vrot.lane.b32.xlu0 %v915, 112
    %v928 = vpop.permute.xlu0 %927
    %929 = vrot.lane.b32.xlu0 %v916, 112
    %v930 = vpop.permute.xlu0 %929
    %931 = vrot.lane.b32.xlu0 %v917, 112
    %v932 = vpop.permute.xlu0 %931
    %v933 = vsel %vm272, %v924, %v926
    %v934 = vsel %vm272, %v926, %v928
    %v935 = vsel %vm272, %v928, %v930
    %v936 = vsel %vm272, %v930, %v932
    %941 = vst [vmem:[#allocation3 + $0xe0] sm:$0xff] %v933
    %942 = vst [vmem:[#allocation3 + $0xe8] sm:$0xff] %v934
    %943 = vst [vmem:[#allocation3 + $0xf0] sm:$0xff] %v935
    %944 = vst [vmem:[#allocation3 + $0xf8] sm:$0xff] %v936
    %v945 = vld [vmem:[#allocation2 + $0x8] sm:$0xff]
    %v946 = vld [vmem:[#allocation2 + $0x10] sm:$0xff]
    %v947 = vld [vmem:[#allocation2 + $0x18] sm:$0xff]
    %v948 = vld [vmem:[#allocation2 + $0x20] sm:$0xff]
    %v949 = vld [vmem:[#allocation2 + $0x28] sm:$0xff]
    %s950 = scalar_lea.vmem %s6, 32
    %v951 = vld [vmem:[%s950] sm:$0xf]
    %v954 = vunpack.c.l.s4 1966171168
    %v955 = vunpack.c.0.s8 %v954
    %v956 = vlaneseq
    %v957 = vshrl.u32 %v956, 7
    %v958 = vsub.s32 %v955, %v957
    %v959 = vrot.slane %v951, %v958
    %v960 = vcombine.high %v959, %v959
    %v962 = vunpack.c.l.s4 1966171168
    %v963 = vunpack.c.0.s8 %v962
    %v964 = vlaneseq
    %v965 = vshrl.u32 %v964, 7
    %v966 = vsub.s32 %v963, %v965
    %v967 = vrot.slane %v959, %v966
    %v969 = vunpack.c.l.s4 1966171168
    %v970 = vunpack.c.0.s8 %v969
    %v971 = vlaneseq
    %v972 = vshrl.u32 %v971, 7
    %v973 = vsub.s32 %v970, %v972
    %v974 = vrot.slane %v960, %v973
    %v975 = vcombine.high %v967, %v967
    %v976 = vcombine.high %v974, %v974
    %v978 = vpack.i.b16 %v967, %v967
    %v980 = vlaneseq
    %v981 = vshrl.u32 %v980, 7
    %v982 = vsub.s32 0, %v981
    %v983 = vrot.slane %v978, %v982
    %v985 = vpack.i.b16 %v974, %v974
    %v987 = vlaneseq
    %v988 = vshrl.u32 %v987, 7
    %v989 = vsub.s32 0, %v988
    %v990 = vrot.slane %v985, %v989
    %v992 = vpack.i.b16 %v975, %v975
    %v994 = vlaneseq
    %v995 = vshrl.u32 %v994, 7
    %v996 = vsub.s32 0, %v995
    %v997 = vrot.slane %v992, %v996
    %v999 = vpack.i.b16 %v976, %v976
    %v1001 = vlaneseq
    %v1002 = vshrl.u32 %v1001, 7
    %v1003 = vsub.s32 0, %v1002
    %v1004 = vrot.slane %v999, %v1003
    %1009 = vrot.lane.b32.xlu0 %v983, 17
    %v1010 = vpop.permute.xlu0 %1009
    %1011 = vrot.lane.b32.xlu0 %v990, 17
    %v1012 = vpop.permute.xlu0 %1011
    %1013 = vrot.lane.b32.xlu0 %v997, 17
    %v1014 = vpop.permute.xlu0 %1013
    %1015 = vrot.lane.b32.xlu0 %v1004, 17
    %v1016 = vpop.permute.xlu0 %1015
    %v1017 = vsel %vm187, %v1010, %v1012
    %v1018 = vsel %vm187, %v1012, %v1014
    %v1019 = vsel %vm187, %v1014, %v1016
    %v1025 = vmul.bf16 %v945, %v1010
    %v1026 = vmul.bf16 %v946, %v1017
    %v1027 = vmul.bf16 %v947, %v1018
    %v1028 = vmul.bf16 %v948, %v1019
    %v1029 = vmul.bf16 %v949, %v1016
    %1035 = vrot.lane.b32.xlu0 %v1025, 111
    %v1036 = vpop.permute.xlu0 %1035
    %1037 = vrot.lane.b32.xlu0 %v1026, 111
    %v1038 = vpop.permute.xlu0 %1037
    %1039 = vrot.lane.b32.xlu0 %v1027, 111
    %v1040 = vpop.permute.xlu0 %1039
    %1041 = vrot.lane.b32.xlu0 %v1028, 111
    %v1042 = vpop.permute.xlu0 %1041
    %1043 = vrot.lane.b32.xlu0 %v1029, 111
    %v1044 = vpop.permute.xlu0 %1043
    %v1045 = vsel %vm158, %v1036, %v1038
    %v1046 = vsel %vm158, %v1038, %v1040
    %v1047 = vsel %vm158, %v1040, %v1042
    %v1048 = vsel %vm158, %v1042, %v1044
    %1053 = vst [vmem:[#allocation3 + $0x100] sm:$0xff] %v1045
    %1054 = vst [vmem:[#allocation3 + $0x108] sm:$0xff] %v1046
    %1055 = vst [vmem:[#allocation3 + $0x110] sm:$0xff] %v1047
    %1056 = vst [vmem:[#allocation3 + $0x118] sm:$0xff] %v1048
    %v1057 = vld [vmem:[%s2] sm:$0xff]
    %v1058 = vld [vmem:[%s2 + $0x8] sm:$0xff]
    %v1059 = vld [vmem:[%s2 + $0x10] sm:$0xff]
    %v1060 = vld [vmem:[#allocation3] sm:$0xff]
    %v1061 = vld [vmem:[#allocation3 + $0x8] sm:$0xff]
    %v1062 = vld [vmem:[#allocation3 + $0x10] sm:$0xff]
    %v1063 = vld [vmem:[#allocation3 + $0x18] sm:$0xff]
    %v1064 = vld [vmem:[#allocation3 + $0x20] sm:$0xff]
    %v1065 = vld [vmem:[#allocation3 + $0x28] sm:$0xff]
    %v1066 = vld [vmem:[#allocation3 + $0x30] sm:$0xff]
    %v1067 = vld [vmem:[#allocation3 + $0x38] sm:$0xff]
    %v1068 = vld [vmem:[#allocation3 + $0x40] sm:$0xff]
    %v1069 = vld [vmem:[#allocation3 + $0x48] sm:$0xff]
    %v1070 = vld [vmem:[#allocation3 + $0x50] sm:$0xff]
    %v1071 = vld [vmem:[#allocation3 + $0x58] sm:$0xff]
    %v1072 = vld [vmem:[#allocation3 + $0x60] sm:$0xff]
    %v1073 = vld [vmem:[#allocation3 + $0x68] sm:$0xff]
    %v1074 = vld [vmem:[#allocation3 + $0x70] sm:$0xff]
    %v1075 = vld [vmem:[#allocation3 + $0x78] sm:$0xff]
    %v1076 = vld [vmem:[#allocation3 + $0x80] sm:$0xff]
    %v1077 = vld [vmem:[#allocation3 + $0x88] sm:$0xff]
    %v1078 = vld [vmem:[#allocation3 + $0x90] sm:$0xff]
    %v1079 = vld [vmem:[#allocation3 + $0x98] sm:$0xff]
    %v1080 = vld [vmem:[#allocation3 + $0xa0] sm:$0xff]
    %v1081 = vld [vmem:[#allocation3 + $0xa8] sm:$0xff]
    %v1082 = vld [vmem:[#allocation3 + $0xb0] sm:$0xff]
    %v1083 = vld [vmem:[#allocation3 + $0xb8] sm:$0xff]
    %v1084 = vld [vmem:[#allocation3 + $0xc0] sm:$0xff]
    %v1085 = vld [vmem:[#allocation3 + $0xc8] sm:$0xff]
    %v1086 = vld [vmem:[#allocation3 + $0xd0] sm:$0xff]
    %v1087 = vld [vmem:[#allocation3 + $0xd8] sm:$0xff]
    %v1088 = vld [vmem:[#allocation3 + $0xe0] sm:$0xff]
    %v1089 = vld [vmem:[#allocation3 + $0xe8] sm:$0xff]
    %v1090 = vld [vmem:[#allocation3 + $0xf0] sm:$0xff]
    %v1091 = vld [vmem:[#allocation3 + $0xf8] sm:$0xff]
    %v1092 = vld [vmem:[#allocation3 + $0x100] sm:$0xff]
    %v1093 = vld [vmem:[#allocation3 + $0x108] sm:$0xff]
    %v1094 = vld [vmem:[#allocation3 + $0x110] sm:$0xff]
    %v1095 = vld [vmem:[#allocation3 + $0x118] sm:$0xff]
    %v1099 = vunpack.c.l.b16 %v1057
    %v1100 = vunpack.c.h.b16 %v1057
    %v1101 = vunpack.c.l.b16 %v1058
    %v1102 = vunpack.c.h.b16 %v1058
    %v1103 = vunpack.c.l.b16 %v1059
    %v1104 = vunpack.c.h.b16 %v1059
    %v1105 = vpack.c.b16 %v1101, %v1099
    %v1106 = vpack.c.b16 %v1102, %v1100
    %v1107 = vpack.c.b16 %v1103, %v1103
    %v1108 = vpack.c.b16 %v1104, %v1104
    %vm1111 = vcmask 130048
    %v1113 = vsel %vm1111, %v1106, 0
    %v1116 = vsel %vm1111, %v1108, 0
    %1118 = vmatprep.subr.bf16.mxu0 %v1061
    %1119 = vmatpush1.bf16.msra.mxu0 %v1060
    %1120 = vmatprep.subr.bf16.mxu0 %v1065
    %1121 = vmatpush1.bf16.msra.mxu0 %v1064
    %1122 = vmatprep.subr.bf16.mxu0 %v1069
    %1123 = vmatpush1.bf16.msra.mxu0 %v1068
    %1124 = vmatprep.subr.bf16.mxu0 %v1073
    %1125 = vmatpush1.bf16.msra.mxu0 %v1072
    %1126 = vmatprep.subr.bf16.mxu0 %v1077
    %1127 = vmatpush1.bf16.msra.mxu0 %v1076
    %1128 = vmatprep.subr.bf16.mxu0 %v1081
    %1129 = vmatpush1.bf16.msra.mxu0 %v1080
    %1130 = vmatprep.subr.bf16.mxu0 %v1085
    %1131 = vmatpush1.bf16.msra.mxu0 %v1084
    %1132 = vmatprep.subr.bf16.mxu0 %v1089
    %1133 = vmatpush1.bf16.msra.mxu0 %v1088
    %1134 = vmatprep.subr.bf16.mxu0 %v1093
    %1135 = vmatpush1.bf16.msra.mxu0 %v1092
    %1136 = vmatprep.subr.bf16.mxu0 0
    %1137 = vmatpush1.bf16.msra.mxu0 0
    %1138 = vmatprep.subr.bf16.mxu0 0
    %1139 = vmatpush1.bf16.msra.mxu0 0
    %1140 = vmatprep.subr.bf16.mxu0 0
    %1141 = vmatpush1.bf16.msra.mxu0 0
    %1142 = vmatprep.subr.bf16.mxu0 0
    %1143 = vmatpush1.bf16.msra.mxu0 0
    %1144 = vmatprep.subr.bf16.mxu0 0
    %1145 = vmatpush1.bf16.msra.mxu0 0
    %1146 = vmatprep.subr.bf16.mxu0 0
    %1147 = vmatpush1.bf16.msra.mxu0 0
    %1148 = vmatprep.subr.bf16.mxu0 0
    %1149 = vmatpush1.bf16.msra.mxu0 0
    %1150 = vmatprep.mubr.bf16.mxu0 %v1113
    %1151 = vmatmul.mubr.bf16.gmra.mrb[0].mxu0 %v1105
    %v1152 = vpop.f32.mrb[0].mxu0
    %v1153 = vadd.f32 0.0, %v1152
    %v1154 = vpop.f32.mrb[0].mxu0
    %v1155 = vadd.f32 0.0, %v1154
    %v1156 = vpop.f32.mrb[0].mxu0
    %v1157 = vadd.f32 0.0, %v1156
    %v1158 = vpop.f32.mrb[0].mxu0
    %v1159 = vadd.f32 0.0, %v1158
    %1160 = vmatprep.mubr.bf16.mxu0 %v1116
    %1161 = vmatmul.mubr.bf16.gmra.mrb[0].mxu0 %v1107
    %v1162 = vpop.f32.mrb[0].mxu0
    %v1163 = vadd.f32 0.0, %v1162
    %v1164 = vpop.f32.mrb[0].mxu0
    %v1165 = vadd.f32 0.0, %v1164
    %v1166 = vpop.f32.mrb[0].mxu0
    %v1167 = vpop.f32.mrb[0].mxu0
    %1168 = vdwg.mxu0
    %1169 = vmatprep.subr.bf16.mxu0 %v1063
    %1170 = vmatpush1.bf16.msra.mxu0 %v1062
    %1171 = vmatprep.subr.bf16.mxu0 %v1067
    %1172 = vmatpush1.bf16.msra.mxu0 %v1066
    %1173 = vmatprep.subr.bf16.mxu0 %v1071
    %1174 = vmatpush1.bf16.msra.mxu0 %v1070
    %1175 = vmatprep.subr.bf16.mxu0 %v1075
    %1176 = vmatpush1.bf16.msra.mxu0 %v1074
    %1177 = vmatprep.subr.bf16.mxu0 %v1079
    %1178 = vmatpush1.bf16.msra.mxu0 %v1078
    %1179 = vmatprep.subr.bf16.mxu0 %v1083
    %1180 = vmatpush1.bf16.msra.mxu0 %v1082
    %1181 = vmatprep.subr.bf16.mxu0 %v1087
    %1182 = vmatpush1.bf16.msra.mxu0 %v1086
    %1183 = vmatprep.subr.bf16.mxu0 %v1091
    %1184 = vmatpush1.bf16.msra.mxu0 %v1090
    %1185 = vmatprep.subr.bf16.mxu0 %v1095
    %1186 = vmatpush1.bf16.msra.mxu0 %v1094
    %1187 = vmatprep.subr.bf16.mxu0 0
    %1188 = vmatpush1.bf16.msra.mxu0 0
    %1189 = vmatprep.subr.bf16.mxu0 0
    %1190 = vmatpush1.bf16.msra.mxu0 0
    %1191 = vmatprep.subr.bf16.mxu0 0
    %1192 = vmatpush1.bf16.msra.mxu0 0
    %1193 = vmatprep.subr.bf16.mxu0 0
    %1194 = vmatpush1.bf16.msra.mxu0 0
    %1195 = vmatprep.subr.bf16.mxu0 0
    %1196 = vmatpush1.bf16.msra.mxu0 0
    %1197 = vmatprep.subr.bf16.mxu0 0
    %1198 = vmatpush1.bf16.msra.mxu0 0
    %1199 = vmatprep.subr.bf16.mxu0 0
    %1200 = vmatpush1.bf16.msra.mxu0 0
    %1201 = vmatprep.mubr.bf16.mxu0 %v1113
    %1202 = vmatmul.mubr.bf16.gmra.mrb[0].mxu0 %v1105
    %v1203 = vpop.f32.mrb[0].mxu0
    %v1204 = vadd.f32 0.0, %v1203
    %v1205 = vpop.f32.mrb[0].mxu0
    %v1206 = vadd.f32 0.0, %v1205
    %v1207 = vpop.f32.mrb[0].mxu0
    %v1208 = vadd.f32 0.0, %v1207
    %v1209 = vpop.f32.mrb[0].mxu0
    %v1210 = vadd.f32 0.0, %v1209
    %1211 = vmatprep.mubr.bf16.mxu0 %v1116
    %1212 = vmatmul.mubr.bf16.gmra.mrb[0].mxu0 %v1107
    %v1213 = vpop.f32.mrb[0].mxu0
    %v1214 = vadd.f32 0.0, %v1213
    %v1215 = vpop.f32.mrb[0].mxu0
    %v1216 = vadd.f32 0.0, %v1215
    %v1217 = vpop.f32.mrb[0].mxu0
    %v1218 = vpop.f32.mrb[0].mxu0
    %1219 = vdwg.mxu0
    %v1220 = vld [vmem:[%s4] sm:$0xff]
    %v1221 = vld [vmem:[%s4 + $0x8] sm:$0xff]
    %1223 = vset.pattern.permute.xlu0 0
    %1224 = vperm.xlu0 %1223, %v1220
    %v1225 = vpop.permute.xlu0 %1224
    %1228 = vset.pattern.permute.xlu0 0
    %1229 = vperm.xlu0 %1228, %v1221
    %v1230 = vpop.permute.xlu0 %1229
    %v1232 = vadd.f32 %v1153, %v1225
    %v1233 = vadd.f32 %v1155, %v1225
    %v1234 = vadd.f32 %v1204, %v1225
    %v1235 = vadd.f32 %v1206, %v1225
    %v1236 = vadd.f32 %v1157, %v1230
    %v1237 = vadd.f32 %v1159, %v1230
    %v1238 = vadd.f32 %v1208, %v1230
    %v1239 = vadd.f32 %v1210, %v1230
    %v1240 = vxor.u32 %v1232, 2147483648
    %v1241 = vxor.u32 %v1233, 2147483648
    %v1242 = vxor.u32 %v1234, 2147483648
    %v1243 = vxor.u32 %v1235, 2147483648
    %v1244 = vmul.f32 %v1240, 1.442695
    %v1245 = vpow.pop %v1244
    %v1246 = vmul.f32 %v1241, 1.442695
    %v1247 = vpow.pop %v1246
    %v1248 = vmul.f32 %v1242, 1.442695
    %v1249 = vpow.pop %v1248
    %v1250 = vmul.f32 %v1243, 1.442695
    %v1251 = vpow.pop %v1250
    %v1252 = vadd.f32 %v1245, 1.0
    %v1253 = vadd.f32 %v1247, 1.0
    %v1254 = vadd.f32 %v1249, 1.0
    %v1255 = vadd.f32 %v1251, 1.0
    %v1256 = vrcp.pop %v1252
    %v1257 = vmul.f32 1.0, %v1256
    %v1258 = vrcp.pop %v1253
    %v1259 = vmul.f32 1.0, %v1258
    %v1260 = vrcp.pop %v1254
    %v1261 = vmul.f32 1.0, %v1260
    %v1262 = vrcp.pop %v1255
    %v1263 = vmul.f32 1.0, %v1262
    %v1264 = vxor.u32 %v1236, 2147483648
    %v1265 = vxor.u32 %v1237, 2147483648
    %v1266 = vxor.u32 %v1238, 2147483648
    %v1267 = vxor.u32 %v1239, 2147483648
    %v1268 = vmul.f32 %v1264, 1.442695
    %v1269 = vpow.pop %v1268
    %v1270 = vmul.f32 %v1265, 1.442695
    %v1271 = vpow.pop %v1270
    %v1272 = vmul.f32 %v1266, 1.442695
    %v1273 = vpow.pop %v1272
    %v1274 = vmul.f32 %v1267, 1.442695
    %v1275 = vpow.pop %v1274
    %v1276 = vadd.f32 %v1269, 1.0
    %v1277 = vadd.f32 %v1271, 1.0
    %v1278 = vadd.f32 %v1273, 1.0
    %v1279 = vadd.f32 %v1275, 1.0
    %v1280 = vrcp.pop %v1276
    %v1281 = vmul.f32 1.0, %v1280
    %v1282 = vrcp.pop %v1277
    %v1283 = vmul.f32 1.0, %v1282
    %v1284 = vrcp.pop %v1278
    %v1285 = vmul.f32 1.0, %v1284
    %v1286 = vrcp.pop %v1279
    %v1287 = vmul.f32 1.0, %v1286
    %v1288 = vmul.f32 %v1257, %v30
    %v1289 = vmul.f32 %v1259, %v31
    %v1290 = vmul.f32 %v1261, %v32
    %v1291 = vmul.f32 %v1263, %v33
    %v1292 = vpack.c.bf16 %v1288, %v1288
    %v1293 = vpack.c.bf16 %v1289, %v1289
    %v1294 = vpack.c.bf16 %v1290, %v1290
    %v1295 = vpack.c.bf16 %v1291, %v1291
    %1296 = vst [vmem:[#allocation2 + $0x8] sm:$0xf] %v1292
    %1297 = vst [vmem:[#allocation2 + $0x10] sm:$0xf] %v1293
    %1298 = vst [vmem:[#allocation2 + $0x18] sm:$0xf] %v1294
    %1299 = vst [vmem:[#allocation2 + $0x20] sm:$0xf] %v1295
    %v1300 = vld [vmem:[#allocation2] sm:$0xf]
    %v1301 = vld [vmem:[#allocation2 + $0x8] sm:$0xf]
    %v1302 = vld [vmem:[#allocation2 + $0x10] sm:$0xf]
    %v1303 = vld [vmem:[#allocation2 + $0x18] sm:$0xf]
    %v1304 = vld [vmem:[#allocation2 + $0x20] sm:$0xf]
    %v1305 = vld [vmem:[%s6] sm:$0xf]
    %v1308 = vunpack.c.l.s4 1966171168
    %v1309 = vunpack.c.0.s8 %v1308
    %v1310 = vlaneseq
    %v1311 = vshrl.u32 %v1310, 7
    %v1312 = vsub.s32 %v1309, %v1311
    %v1313 = vrot.slane %v1305, %v1312
    %v1314 = vcombine.high %v1313, %v1313
    %v1316 = vunpack.c.l.s4 1966171168
    %v1317 = vunpack.c.0.s8 %v1316
    %v1318 = vlaneseq
    %v1319 = vshrl.u32 %v1318, 7
    %v1320 = vsub.s32 %v1317, %v1319
    %v1321 = vrot.slane %v1313, %v1320
    %v1323 = vunpack.c.l.s4 1966171168
    %v1324 = vunpack.c.0.s8 %v1323
    %v1325 = vlaneseq
    %v1326 = vshrl.u32 %v1325, 7
    %v1327 = vsub.s32 %v1324, %v1326
    %v1328 = vrot.slane %v1314, %v1327
    %v1329 = vcombine.high %v1321, %v1321
    %v1330 = vcombine.high %v1328, %v1328
    %v1332 = vpack.i.b16 %v1321, %v1321
    %v1334 = vlaneseq
    %v1335 = vshrl.u32 %v1334, 7
    %v1336 = vsub.s32 0, %v1335
    %v1337 = vrot.slane %v1332, %v1336
    %v1339 = vpack.i.b16 %v1328, %v1328
    %v1341 = vlaneseq
    %v1342 = vshrl.u32 %v1341, 7
    %v1343 = vsub.s32 0, %v1342
    %v1344 = vrot.slane %v1339, %v1343
    %v1346 = vpack.i.b16 %v1329, %v1329
    %v1348 = vlaneseq
    %v1349 = vshrl.u32 %v1348, 7
    %v1350 = vsub.s32 0, %v1349
    %v1351 = vrot.slane %v1346, %v1350
    %v1353 = vpack.i.b16 %v1330, %v1330
    %v1355 = vlaneseq
    %v1356 = vshrl.u32 %v1355, 7
    %v1357 = vsub.s32 0, %v1356
    %v1358 = vrot.slane %v1353, %v1357
    %1363 = vrot.lane.b32.xlu0 %v1337, 111
    %v1364 = vpop.permute.xlu0 %1363
    %1365 = vrot.lane.b32.xlu0 %v1344, 111
    %v1366 = vpop.permute.xlu0 %1365
    %1367 = vrot.lane.b32.xlu0 %v1351, 111
    %v1368 = vpop.permute.xlu0 %1367
    %1369 = vrot.lane.b32.xlu0 %v1358, 111
    %v1370 = vpop.permute.xlu0 %1369
    %v1371 = vsel %vm158, %v1364, %v1366
    %v1372 = vsel %vm158, %v1366, %v1368
    %v1373 = vsel %vm158, %v1368, %v1370
    %v1379 = vmul.bf16 %v1300, %v1364
    %v1380 = vmul.bf16 %v1301, %v1371
    %v1381 = vmul.bf16 %v1302, %v1372
    %v1382 = vmul.bf16 %v1303, %v1373
    %v1383 = vmul.bf16 %v1304, %v1370
    %1389 = vrot.lane.b32.xlu0 %v1379, 17
    %v1390 = vpop.permute.xlu0 %1389
    %1391 = vrot.lane.b32.xlu0 %v1380, 17
    %v1392 = vpop.permute.xlu0 %1391
    %1393 = vrot.lane.b32.xlu0 %v1381, 17
    %v1394 = vpop.permute.xlu0 %1393
    %1395 = vrot.lane.b32.xlu0 %v1382, 17
    %v1396 = vpop.permute.xlu0 %1395
    %1397 = vrot.lane.b32.xlu0 %v1383, 17
    %v1398 = vpop.permute.xlu0 %1397
    %v1399 = vsel %vm187, %v1390, %v1392
    %v1400 = vsel %vm187, %v1392, %v1394
    %v1401 = vsel %vm187, %v1394, %v1396
    %v1402 = vsel %vm187, %v1396, %v1398
    %1407 = vst [vmem:[#allocation3] sm:$0xf] %v1399
    %1408 = vst [vmem:[#allocation3 + $0x8] sm:$0xf] %v1400
    %1409 = vst [vmem:[#allocation3 + $0x10] sm:$0xf] %v1401
    %1410 = vst [vmem:[#allocation3 + $0x18] sm:$0xf] %v1402
    %v1411 = vld [vmem:[#allocation2] sm:$0xf]
    %v1412 = vld [vmem:[#allocation2 + $0x8] sm:$0xf]
    %v1413 = vld [vmem:[#allocation2 + $0x10] sm:$0xf]
    %v1414 = vld [vmem:[#allocation2 + $0x18] sm:$0xf]
    %v1415 = vld [vmem:[#allocation2 + $0x20] sm:$0xf]
    %v1416 = vld [vmem:[%s205] sm:$0xf]
    %v1419 = vunpack.c.l.s4 1966171168
    %v1420 = vunpack.c.0.s8 %v1419
    %v1421 = vlaneseq
    %v1422 = vshrl.u32 %v1421, 7
    %v1423 = vsub.s32 %v1420, %v1422
    %v1424 = vrot.slane %v1416, %v1423
    %v1425 = vcombine.high %v1424, %v1424
    %v1427 = vunpack.c.l.s4 1966171168
    %v1428 = vunpack.c.0.s8 %v1427
    %v1429 = vlaneseq
    %v1430 = vshrl.u32 %v1429, 7
    %v1431 = vsub.s32 %v1428, %v1430
    %v1432 = vrot.slane %v1424, %v1431
    %v1434 = vunpack.c.l.s4 1966171168
    %v1435 = vunpack.c.0.s8 %v1434
    %v1436 = vlaneseq
    %v1437 = vshrl.u32 %v1436, 7
    %v1438 = vsub.s32 %v1435, %v1437
    %v1439 = vrot.slane %v1425, %v1438
    %v1440 = vcombine.high %v1432, %v1432
    %v1441 = vcombine.high %v1439, %v1439
    %v1443 = vpack.i.b16 %v1432, %v1432
    %v1445 = vlaneseq
    %v1446 = vshrl.u32 %v1445, 7
    %v1447 = vsub.s32 0, %v1446
    %v1448 = vrot.slane %v1443, %v1447
    %v1450 = vpack.i.b16 %v1439, %v1439
    %v1452 = vlaneseq
    %v1453 = vshrl.u32 %v1452, 7
    %v1454 = vsub.s32 0, %v1453
    %v1455 = vrot.slane %v1450, %v1454
    %v1457 = vpack.i.b16 %v1440, %v1440
    %v1459 = vlaneseq
    %v1460 = vshrl.u32 %v1459, 7
    %v1461 = vsub.s32 0, %v1460
    %v1462 = vrot.slane %v1457, %v1461
    %v1464 = vpack.i.b16 %v1441, %v1441
    %v1466 = vlaneseq
    %v1467 = vshrl.u32 %v1466, 7
    %v1468 = vsub.s32 0, %v1467
    %v1469 = vrot.slane %v1464, %v1468
    %1474 = vrot.lane.b32.xlu0 %v1448, 112
    %v1475 = vpop.permute.xlu0 %1474
    %1476 = vrot.lane.b32.xlu0 %v1455, 112
    %v1477 = vpop.permute.xlu0 %1476
    %1478 = vrot.lane.b32.xlu0 %v1462, 112
    %v1479 = vpop.permute.xlu0 %1478
    %1480 = vrot.lane.b32.xlu0 %v1469, 112
    %v1481 = vpop.permute.xlu0 %1480
    %v1482 = vsel %vm272, %v1475, %v1477
    %v1483 = vsel %vm272, %v1477, %v1479
    %v1484 = vsel %vm272, %v1479, %v1481
    %v1490 = vmul.bf16 %v1411, %v1475
    %v1491 = vmul.bf16 %v1412, %v1482
    %v1492 = vmul.bf16 %v1413, %v1483
    %v1493 = vmul.bf16 %v1414, %v1484
    %v1494 = vmul.bf16 %v1415, %v1481
    %1500 = vrot.lane.b32.xlu0 %v1490, 16
    %v1501 = vpop.permute.xlu0 %1500
    %1502 = vrot.lane.b32.xlu0 %v1491, 16
    %v1503 = vpop.permute.xlu0 %1502
    %1504 = vrot.lane.b32.xlu0 %v1492, 16
    %v1505 = vpop.permute.xlu0 %1504
    %1506 = vrot.lane.b32.xlu0 %v1493, 16
    %v1507 = vpop.permute.xlu0 %1506
    %1508 = vrot.lane.b32.xlu0 %v1494, 16
    %v1509 = vpop.permute.xlu0 %1508
    %v1510 = vsel %vm301, %v1501, %v1503
    %v1511 = vsel %vm301, %v1503, %v1505
    %v1512 = vsel %vm301, %v1505, %v1507
    %v1513 = vsel %vm301, %v1507, %v1509
    %1518 = vst [vmem:[#allocation3 + $0x20] sm:$0xf] %v1510
    %1519 = vst [vmem:[#allocation3 + $0x28] sm:$0xf] %v1511
    %1520 = vst [vmem:[#allocation3 + $0x30] sm:$0xf] %v1512
    %1521 = vst [vmem:[#allocation3 + $0x38] sm:$0xf] %v1513
    %v1522 = vld [vmem:[#allocation2] sm:$0xf]
    %v1523 = vld [vmem:[#allocation2 + $0x8] sm:$0xf]
    %v1524 = vld [vmem:[#allocation2 + $0x10] sm:$0xf]
    %v1525 = vld [vmem:[#allocation2 + $0x18] sm:$0xf]
    %v1526 = vld [vmem:[#allocation2 + $0x20] sm:$0xf]
    %v1527 = vld [vmem:[%s319] sm:$0xf]
    %v1530 = vunpack.c.l.s4 1966171168
    %v1531 = vunpack.c.0.s8 %v1530
    %v1532 = vlaneseq
    %v1533 = vshrl.u32 %v1532, 7
    %v1534 = vsub.s32 %v1531, %v1533
    %v1535 = vrot.slane %v1527, %v1534
    %v1536 = vcombine.high %v1535, %v1535
    %v1538 = vunpack.c.l.s4 1966171168
    %v1539 = vunpack.c.0.s8 %v1538
    %v1540 = vlaneseq
    %v1541 = vshrl.u32 %v1540, 7
    %v1542 = vsub.s32 %v1539, %v1541
    %v1543 = vrot.slane %v1535, %v1542
    %v1545 = vunpack.c.l.s4 1966171168
    %v1546 = vunpack.c.0.s8 %v1545
    %v1547 = vlaneseq
    %v1548 = vshrl.u32 %v1547, 7
    %v1549 = vsub.s32 %v1546, %v1548
    %v1550 = vrot.slane %v1536, %v1549
    %v1551 = vcombine.high %v1543, %v1543
    %v1552 = vcombine.high %v1550, %v1550
    %v1554 = vpack.i.b16 %v1543, %v1543
    %v1556 = vlaneseq
    %v1557 = vshrl.u32 %v1556, 7
    %v1558 = vsub.s32 0, %v1557
    %v1559 = vrot.slane %v1554, %v1558
    %v1561 = vpack.i.b16 %v1550, %v1550
    %v1563 = vlaneseq
    %v1564 = vshrl.u32 %v1563, 7
    %v1565 = vsub.s32 0, %v1564
    %v1566 = vrot.slane %v1561, %v1565
    %v1568 = vpack.i.b16 %v1551, %v1551
    %v1570 = vlaneseq
    %v1571 = vshrl.u32 %v1570, 7
    %v1572 = vsub.s32 0, %v1571
    %v1573 = vrot.slane %v1568, %v1572
    %v1575 = vpack.i.b16 %v1552, %v1552
    %v1577 = vlaneseq
    %v1578 = vshrl.u32 %v1577, 7
    %v1579 = vsub.s32 0, %v1578
    %v1580 = vrot.slane %v1575, %v1579
    %1585 = vrot.lane.b32.xlu0 %v1559, 113
    %v1586 = vpop.permute.xlu0 %1585
    %1587 = vrot.lane.b32.xlu0 %v1566, 113
    %v1588 = vpop.permute.xlu0 %1587
    %1589 = vrot.lane.b32.xlu0 %v1573, 113
    %v1590 = vpop.permute.xlu0 %1589
    %1591 = vrot.lane.b32.xlu0 %v1580, 113
    %v1592 = vpop.permute.xlu0 %1591
    %v1593 = vsel %vm386, %v1586, %v1588
    %v1594 = vsel %vm386, %v1588, %v1590
    %v1595 = vsel %vm386, %v1590, %v1592
    %v1601 = vmul.bf16 %v1522, %v1586
    %v1602 = vmul.bf16 %v1523, %v1593
    %v1603 = vmul.bf16 %v1524, %v1594
    %v1604 = vmul.bf16 %v1525, %v1595
    %v1605 = vmul.bf16 %v1526, %v1592
    %1611 = vrot.lane.b32.xlu0 %v1601, 15
    %v1612 = vpop.permute.xlu0 %1611
    %1613 = vrot.lane.b32.xlu0 %v1602, 15
    %v1614 = vpop.permute.xlu0 %1613
    %1615 = vrot.lane.b32.xlu0 %v1603, 15
    %v1616 = vpop.permute.xlu0 %1615
    %1617 = vrot.lane.b32.xlu0 %v1604, 15
    %v1618 = vpop.permute.xlu0 %1617
    %1619 = vrot.lane.b32.xlu0 %v1605, 15
    %v1620 = vpop.permute.xlu0 %1619
    %v1621 = vsel %vm415, %v1612, %v1614
    %v1622 = vsel %vm415, %v1614, %v1616
    %v1623 = vsel %vm415, %v1616, %v1618
    %v1624 = vsel %vm415, %v1618, %v1620
    %1629 = vst [vmem:[#allocation3 + $0x40] sm:$0xf] %v1621
    %1630 = vst [vmem:[#allocation3 + $0x48] sm:$0xf] %v1622
    %1631 = vst [vmem:[#allocation3 + $0x50] sm:$0xf] %v1623
    %1632 = vst [vmem:[#allocation3 + $0x58] sm:$0xf] %v1624
    %v1633 = vld [vmem:[#allocation2] sm:$0xf]
    %v1634 = vld [vmem:[#allocation2 + $0x8] sm:$0xf]
    %v1635 = vld [vmem:[#allocation2 + $0x10] sm:$0xf]
    %v1636 = vld [vmem:[#allocation2 + $0x18] sm:$0xf]
    %v1637 = vld [vmem:[#allocation2 + $0x20] sm:$0xf]
    %v1638 = vld [vmem:[%s433] sm:$0xf]
    %v1641 = vunpack.c.l.s4 1966171168
    %v1642 = vunpack.c.0.s8 %v1641
    %v1643 = vlaneseq
    %v1644 = vshrl.u32 %v1643, 7
    %v1645 = vsub.s32 %v1642, %v1644
    %v1646 = vrot.slane %v1638, %v1645
    %v1647 = vcombine.high %v1646, %v1646
    %v1649 = vunpack.c.l.s4 1966171168
    %v1650 = vunpack.c.0.s8 %v1649
    %v1651 = vlaneseq
    %v1652 = vshrl.u32 %v1651, 7
    %v1653 = vsub.s32 %v1650, %v1652
    %v1654 = vrot.slane %v1646, %v1653
    %v1656 = vunpack.c.l.s4 1966171168
    %v1657 = vunpack.c.0.s8 %v1656
    %v1658 = vlaneseq
    %v1659 = vshrl.u32 %v1658, 7
    %v1660 = vsub.s32 %v1657, %v1659
    %v1661 = vrot.slane %v1647, %v1660
    %v1662 = vcombine.high %v1654, %v1654
    %v1663 = vcombine.high %v1661, %v1661
    %v1665 = vpack.i.b16 %v1654, %v1654
    %v1667 = vlaneseq
    %v1668 = vshrl.u32 %v1667, 7
    %v1669 = vsub.s32 0, %v1668
    %v1670 = vrot.slane %v1665, %v1669
    %v1672 = vpack.i.b16 %v1661, %v1661
    %v1674 = vlaneseq
    %v1675 = vshrl.u32 %v1674, 7
    %v1676 = vsub.s32 0, %v1675
    %v1677 = vrot.slane %v1672, %v1676
    %v1679 = vpack.i.b16 %v1662, %v1662
    %v1681 = vlaneseq
    %v1682 = vshrl.u32 %v1681, 7
    %v1683 = vsub.s32 0, %v1682
    %v1684 = vrot.slane %v1679, %v1683
    %v1686 = vpack.i.b16 %v1663, %v1663
    %v1688 = vlaneseq
    %v1689 = vshrl.u32 %v1688, 7
    %v1690 = vsub.s32 0, %v1689
    %v1691 = vrot.slane %v1686, %v1690
    %1696 = vrot.lane.b32.xlu0 %v1670, 127
    %v1697 = vpop.permute.xlu0 %1696
    %1698 = vrot.lane.b32.xlu0 %v1677, 127
    %v1699 = vpop.permute.xlu0 %1698
    %1700 = vrot.lane.b32.xlu0 %v1684, 127
    %v1701 = vpop.permute.xlu0 %1700
    %1702 = vrot.lane.b32.xlu0 %v1691, 127
    %v1703 = vpop.permute.xlu0 %1702
    %v1704 = vsel %vm500, %v1697, %v1699
    %v1705 = vsel %vm500, %v1699, %v1701
    %v1706 = vsel %vm500, %v1701, %v1703
    %v1712 = vmul.bf16 %v1633, %v1697
    %v1713 = vmul.bf16 %v1634, %v1704
    %v1714 = vmul.bf16 %v1635, %v1705
    %v1715 = vmul.bf16 %v1636, %v1706
    %v1716 = vmul.bf16 %v1637, %v1703
    %1722 = vrot.lane.b32.xlu0 %v1712, 1
    %v1723 = vpop.permute.xlu0 %1722
    %1724 = vrot.lane.b32.xlu0 %v1713, 1
    %v1725 = vpop.permute.xlu0 %1724
    %1726 = vrot.lane.b32.xlu0 %v1714, 1
    %v1727 = vpop.permute.xlu0 %1726
    %1728 = vrot.lane.b32.xlu0 %v1715, 1
    %v1729 = vpop.permute.xlu0 %1728
    %1730 = vrot.lane.b32.xlu0 %v1716, 1
    %v1731 = vpop.permute.xlu0 %1730
    %v1732 = vsel %vm529, %v1723, %v1725
    %v1733 = vsel %vm529, %v1725, %v1727
    %v1734 = vsel %vm529, %v1727, %v1729
    %v1735 = vsel %vm529, %v1729, %v1731
    %1740 = vst [vmem:[#allocation3 + $0x60] sm:$0xf] %v1732
    %1741 = vst [vmem:[#allocation3 + $0x68] sm:$0xf] %v1733
    %1742 = vst [vmem:[#allocation3 + $0x70] sm:$0xf] %v1734
    %1743 = vst [vmem:[#allocation3 + $0x78] sm:$0xf] %v1735
    %v1744 = vld [vmem:[#allocation2 + $0x8] sm:$0xf]
    %v1745 = vld [vmem:[#allocation2 + $0x10] sm:$0xf]
    %v1746 = vld [vmem:[#allocation2 + $0x18] sm:$0xf]
    %v1747 = vld [vmem:[#allocation2 + $0x20] sm:$0xf]
    %v1748 = vld [vmem:[%s546] sm:$0xf]
    %v1751 = vunpack.c.l.s4 1966171168
    %v1752 = vunpack.c.0.s8 %v1751
    %v1753 = vlaneseq
    %v1754 = vshrl.u32 %v1753, 7
    %v1755 = vsub.s32 %v1752, %v1754
    %v1756 = vrot.slane %v1748, %v1755
    %v1757 = vcombine.high %v1756, %v1756
    %v1759 = vunpack.c.l.s4 1966171168
    %v1760 = vunpack.c.0.s8 %v1759
    %v1761 = vlaneseq
    %v1762 = vshrl.u32 %v1761, 7
    %v1763 = vsub.s32 %v1760, %v1762
    %v1764 = vrot.slane %v1756, %v1763
    %v1766 = vunpack.c.l.s4 1966171168
    %v1767 = vunpack.c.0.s8 %v1766
    %v1768 = vlaneseq
    %v1769 = vshrl.u32 %v1768, 7
    %v1770 = vsub.s32 %v1767, %v1769
    %v1771 = vrot.slane %v1757, %v1770
    %v1772 = vcombine.high %v1764, %v1764
    %v1773 = vcombine.high %v1771, %v1771
    %v1775 = vpack.i.b16 %v1764, %v1764
    %v1777 = vlaneseq
    %v1778 = vshrl.u32 %v1777, 7
    %v1779 = vsub.s32 0, %v1778
    %v1780 = vrot.slane %v1775, %v1779
    %v1782 = vpack.i.b16 %v1771, %v1771
    %v1784 = vlaneseq
    %v1785 = vshrl.u32 %v1784, 7
    %v1786 = vsub.s32 0, %v1785
    %v1787 = vrot.slane %v1782, %v1786
    %v1789 = vpack.i.b16 %v1772, %v1772
    %v1791 = vlaneseq
    %v1792 = vshrl.u32 %v1791, 7
    %v1793 = vsub.s32 0, %v1792
    %v1794 = vrot.slane %v1789, %v1793
    %v1796 = vpack.i.b16 %v1773, %v1773
    %v1798 = vlaneseq
    %v1799 = vshrl.u32 %v1798, 7
    %v1800 = vsub.s32 0, %v1799
    %v1801 = vrot.slane %v1796, %v1800
    %v1802 = vmul.bf16 %v1744, %v1780
    %v1803 = vmul.bf16 %v1745, %v1787
    %v1804 = vmul.bf16 %v1746, %v1794
    %v1805 = vmul.bf16 %v1747, %v1801
    %1806 = vst [vmem:[#allocation3 + $0x80] sm:$0xf] %v1802
    %1807 = vst [vmem:[#allocation3 + $0x88] sm:$0xf] %v1803
    %1808 = vst [vmem:[#allocation3 + $0x90] sm:$0xf] %v1804
    %1809 = vst [vmem:[#allocation3 + $0x98] sm:$0xf] %v1805
    %v1810 = vld [vmem:[#allocation2 + $0x8] sm:$0xf]
    %v1811 = vld [vmem:[#allocation2 + $0x10] sm:$0xf]
    %v1812 = vld [vmem:[#allocation2 + $0x18] sm:$0xf]
    %v1813 = vld [vmem:[#allocation2 + $0x20] sm:$0xf]
    %v1814 = vld [vmem:[#allocation2 + $0x28] sm:$0xf]
    %v1815 = vld [vmem:[%s614] sm:$0xf]
    %v1818 = vunpack.c.l.s4 1966171168
    %v1819 = vunpack.c.0.s8 %v1818
    %v1820 = vlaneseq
    %v1821 = vshrl.u32 %v1820, 7
    %v1822 = vsub.s32 %v1819, %v1821
    %v1823 = vrot.slane %v1815, %v1822
    %v1824 = vcombine.high %v1823, %v1823
    %v1826 = vunpack.c.l.s4 1966171168
    %v1827 = vunpack.c.0.s8 %v1826
    %v1828 = vlaneseq
    %v1829 = vshrl.u32 %v1828, 7
    %v1830 = vsub.s32 %v1827, %v1829
    %v1831 = vrot.slane %v1823, %v1830
    %v1833 = vunpack.c.l.s4 1966171168
    %v1834 = vunpack.c.0.s8 %v1833
    %v1835 = vlaneseq
    %v1836 = vshrl.u32 %v1835, 7
    %v1837 = vsub.s32 %v1834, %v1836
    %v1838 = vrot.slane %v1824, %v1837
    %v1839 = vcombine.high %v1831, %v1831
    %v1840 = vcombine.high %v1838, %v1838
    %v1842 = vpack.i.b16 %v1831, %v1831
    %v1844 = vlaneseq
    %v1845 = vshrl.u32 %v1844, 7
    %v1846 = vsub.s32 0, %v1845
    %v1847 = vrot.slane %v1842, %v1846
    %v1849 = vpack.i.b16 %v1838, %v1838
    %v1851 = vlaneseq
    %v1852 = vshrl.u32 %v1851, 7
    %v1853 = vsub.s32 0, %v1852
    %v1854 = vrot.slane %v1849, %v1853
    %v1856 = vpack.i.b16 %v1839, %v1839
    %v1858 = vlaneseq
    %v1859 = vshrl.u32 %v1858, 7
    %v1860 = vsub.s32 0, %v1859
    %v1861 = vrot.slane %v1856, %v1860
    %v1863 = vpack.i.b16 %v1840, %v1840
    %v1865 = vlaneseq
    %v1866 = vshrl.u32 %v1865, 7
    %v1867 = vsub.s32 0, %v1866
    %v1868 = vrot.slane %v1863, %v1867
    %1873 = vrot.lane.b32.xlu0 %v1847, 1
    %v1874 = vpop.permute.xlu0 %1873
    %1875 = vrot.lane.b32.xlu0 %v1854, 1
    %v1876 = vpop.permute.xlu0 %1875
    %1877 = vrot.lane.b32.xlu0 %v1861, 1
    %v1878 = vpop.permute.xlu0 %1877
    %1879 = vrot.lane.b32.xlu0 %v1868, 1
    %v1880 = vpop.permute.xlu0 %1879
    %v1881 = vsel %vm529, %v1874, %v1876
    %v1882 = vsel %vm529, %v1876, %v1878
    %v1883 = vsel %vm529, %v1878, %v1880
    %v1889 = vmul.bf16 %v1810, %v1874
    %v1890 = vmul.bf16 %v1811, %v1881
    %v1891 = vmul.bf16 %v1812, %v1882
    %v1892 = vmul.bf16 %v1813, %v1883
    %v1893 = vmul.bf16 %v1814, %v1880
    %1899 = vrot.lane.b32.xlu0 %v1889, 127
    %v1900 = vpop.permute.xlu0 %1899
    %1901 = vrot.lane.b32.xlu0 %v1890, 127
    %v1902 = vpop.permute.xlu0 %1901
    %1903 = vrot.lane.b32.xlu0 %v1891, 127
    %v1904 = vpop.permute.xlu0 %1903
    %1905 = vrot.lane.b32.xlu0 %v1892, 127
    %v1906 = vpop.permute.xlu0 %1905
    %1907 = vrot.lane.b32.xlu0 %v1893, 127
    %v1908 = vpop.permute.xlu0 %1907
    %v1909 = vsel %vm500, %v1900, %v1902
    %v1910 = vsel %vm500, %v1902, %v1904
    %v1911 = vsel %vm500, %v1904, %v1906
    %v1912 = vsel %vm500, %v1906, %v1908
    %1917 = vst [vmem:[#allocation3 + $0xa0] sm:$0xf] %v1909
    %1918 = vst [vmem:[#allocation3 + $0xa8] sm:$0xf] %v1910
    %1919 = vst [vmem:[#allocation3 + $0xb0] sm:$0xf] %v1911
    %1920 = vst [vmem:[#allocation3 + $0xb8] sm:$0xf] %v1912
    %v1921 = vld [vmem:[#allocation2 + $0x8] sm:$0xf]
    %v1922 = vld [vmem:[#allocation2 + $0x10] sm:$0xf]
    %v1923 = vld [vmem:[#allocation2 + $0x18] sm:$0xf]
    %v1924 = vld [vmem:[#allocation2 + $0x20] sm:$0xf]
    %v1925 = vld [vmem:[#allocation2 + $0x28] sm:$0xf]
    %v1926 = vld [vmem:[%s726] sm:$0xf]
    %v1929 = vunpack.c.l.s4 1966171168
    %v1930 = vunpack.c.0.s8 %v1929
    %v1931 = vlaneseq
    %v1932 = vshrl.u32 %v1931, 7
    %v1933 = vsub.s32 %v1930, %v1932
    %v1934 = vrot.slane %v1926, %v1933
    %v1935 = vcombine.high %v1934, %v1934
    %v1937 = vunpack.c.l.s4 1966171168
    %v1938 = vunpack.c.0.s8 %v1937
    %v1939 = vlaneseq
    %v1940 = vshrl.u32 %v1939, 7
    %v1941 = vsub.s32 %v1938, %v1940
    %v1942 = vrot.slane %v1934, %v1941
    %v1944 = vunpack.c.l.s4 1966171168
    %v1945 = vunpack.c.0.s8 %v1944
    %v1946 = vlaneseq
    %v1947 = vshrl.u32 %v1946, 7
    %v1948 = vsub.s32 %v1945, %v1947
    %v1949 = vrot.slane %v1935, %v1948
    %v1950 = vcombine.high %v1942, %v1942
    %v1951 = vcombine.high %v1949, %v1949
    %v1953 = vpack.i.b16 %v1942, %v1942
    %v1955 = vlaneseq
    %v1956 = vshrl.u32 %v1955, 7
    %v1957 = vsub.s32 0, %v1956
    %v1958 = vrot.slane %v1953, %v1957
    %v1960 = vpack.i.b16 %v1949, %v1949
    %v1962 = vlaneseq
    %v1963 = vshrl.u32 %v1962, 7
    %v1964 = vsub.s32 0, %v1963
    %v1965 = vrot.slane %v1960, %v1964
    %v1967 = vpack.i.b16 %v1950, %v1950
    %v1969 = vlaneseq
    %v1970 = vshrl.u32 %v1969, 7
    %v1971 = vsub.s32 0, %v1970
    %v1972 = vrot.slane %v1967, %v1971
    %v1974 = vpack.i.b16 %v1951, %v1951
    %v1976 = vlaneseq
    %v1977 = vshrl.u32 %v1976, 7
    %v1978 = vsub.s32 0, %v1977
    %v1979 = vrot.slane %v1974, %v1978
    %1984 = vrot.lane.b32.xlu0 %v1958, 15
    %v1985 = vpop.permute.xlu0 %1984
    %1986 = vrot.lane.b32.xlu0 %v1965, 15
    %v1987 = vpop.permute.xlu0 %1986
    %1988 = vrot.lane.b32.xlu0 %v1972, 15
    %v1989 = vpop.permute.xlu0 %1988
    %1990 = vrot.lane.b32.xlu0 %v1979, 15
    %v1991 = vpop.permute.xlu0 %1990
    %v1992 = vsel %vm415, %v1985, %v1987
    %v1993 = vsel %vm415, %v1987, %v1989
    %v1994 = vsel %vm415, %v1989, %v1991
    %v2000 = vmul.bf16 %v1921, %v1985
    %v2001 = vmul.bf16 %v1922, %v1992
    %v2002 = vmul.bf16 %v1923, %v1993
    %v2003 = vmul.bf16 %v1924, %v1994
    %v2004 = vmul.bf16 %v1925, %v1991
    %2010 = vrot.lane.b32.xlu0 %v2000, 113
    %v2011 = vpop.permute.xlu0 %2010
    %2012 = vrot.lane.b32.xlu0 %v2001, 113
    %v2013 = vpop.permute.xlu0 %2012
    %2014 = vrot.lane.b32.xlu0 %v2002, 113
    %v2015 = vpop.permute.xlu0 %2014
    %2016 = vrot.lane.b32.xlu0 %v2003, 113
    %v2017 = vpop.permute.xlu0 %2016
    %2018 = vrot.lane.b32.xlu0 %v2004, 113
    %v2019 = vpop.permute.xlu0 %2018
    %v2020 = vsel %vm386, %v2011, %v2013
    %v2021 = vsel %vm386, %v2013, %v2015
    %v2022 = vsel %vm386, %v2015, %v2017
    %v2023 = vsel %vm386, %v2017, %v2019
    %2028 = vst [vmem:[#allocation3 + $0xc0] sm:$0xf] %v2020
    %2029 = vst [vmem:[#allocation3 + $0xc8] sm:$0xf] %v2021
    %2030 = vst [vmem:[#allocation3 + $0xd0] sm:$0xf] %v2022
    %2031 = vst [vmem:[#allocation3 + $0xd8] sm:$0xf] %v2023
    %v2032 = vld [vmem:[#allocation2 + $0x8] sm:$0xf]
    %v2033 = vld [vmem:[#allocation2 + $0x10] sm:$0xf]
    %v2034 = vld [vmem:[#allocation2 + $0x18] sm:$0xf]
    %v2035 = vld [vmem:[#allocation2 + $0x20] sm:$0xf]
    %v2036 = vld [vmem:[#allocation2 + $0x28] sm:$0xf]
    %v2037 = vld [vmem:[%s838] sm:$0xf]
    %v2040 = vunpack.c.l.s4 1966171168
    %v2041 = vunpack.c.0.s8 %v2040
    %v2042 = vlaneseq
    %v2043 = vshrl.u32 %v2042, 7
    %v2044 = vsub.s32 %v2041, %v2043
    %v2045 = vrot.slane %v2037, %v2044
    %v2046 = vcombine.high %v2045, %v2045
    %v2048 = vunpack.c.l.s4 1966171168
    %v2049 = vunpack.c.0.s8 %v2048
    %v2050 = vlaneseq
    %v2051 = vshrl.u32 %v2050, 7
    %v2052 = vsub.s32 %v2049, %v2051
    %v2053 = vrot.slane %v2045, %v2052
    %v2055 = vunpack.c.l.s4 1966171168
    %v2056 = vunpack.c.0.s8 %v2055
    %v2057 = vlaneseq
    %v2058 = vshrl.u32 %v2057, 7
    %v2059 = vsub.s32 %v2056, %v2058
    %v2060 = vrot.slane %v2046, %v2059
    %v2061 = vcombine.high %v2053, %v2053
    %v2062 = vcombine.high %v2060, %v2060
    %v2064 = vpack.i.b16 %v2053, %v2053
    %v2066 = vlaneseq
    %v2067 = vshrl.u32 %v2066, 7
    %v2068 = vsub.s32 0, %v2067
    %v2069 = vrot.slane %v2064, %v2068
    %v2071 = vpack.i.b16 %v2060, %v2060
    %v2073 = vlaneseq
    %v2074 = vshrl.u32 %v2073, 7
    %v2075 = vsub.s32 0, %v2074
    %v2076 = vrot.slane %v2071, %v2075
    %v2078 = vpack.i.b16 %v2061, %v2061
    %v2080 = vlaneseq
    %v2081 = vshrl.u32 %v2080, 7
    %v2082 = vsub.s32 0, %v2081
    %v2083 = vrot.slane %v2078, %v2082
    %v2085 = vpack.i.b16 %v2062, %v2062
    %v2087 = vlaneseq
    %v2088 = vshrl.u32 %v2087, 7
    %v2089 = vsub.s32 0, %v2088
    %v2090 = vrot.slane %v2085, %v2089
    %2095 = vrot.lane.b32.xlu0 %v2069, 16
    %v2096 = vpop.permute.xlu0 %2095
    %2097 = vrot.lane.b32.xlu0 %v2076, 16
    %v2098 = vpop.permute.xlu0 %2097
    %2099 = vrot.lane.b32.xlu0 %v2083, 16
    %v2100 = vpop.permute.xlu0 %2099
    %2101 = vrot.lane.b32.xlu0 %v2090, 16
    %v2102 = vpop.permute.xlu0 %2101
    %v2103 = vsel %vm301, %v2096, %v2098
    %v2104 = vsel %vm301, %v2098, %v2100
    %v2105 = vsel %vm301, %v2100, %v2102
    %v2111 = vmul.bf16 %v2032, %v2096
    %v2112 = vmul.bf16 %v2033, %v2103
    %v2113 = vmul.bf16 %v2034, %v2104
    %v2114 = vmul.bf16 %v2035, %v2105
    %v2115 = vmul.bf16 %v2036, %v2102
    %2121 = vrot.lane.b32.xlu0 %v2111, 112
    %v2122 = vpop.permute.xlu0 %2121
    %2123 = vrot.lane.b32.xlu0 %v2112, 112
    %v2124 = vpop.permute.xlu0 %2123
    %2125 = vrot.lane.b32.xlu0 %v2113, 112
    %v2126 = vpop.permute.xlu0 %2125
    %2127 = vrot.lane.b32.xlu0 %v2114, 112
    %v2128 = vpop.permute.xlu0 %2127
    %2129 = vrot.lane.b32.xlu0 %v2115, 112
    %v2130 = vpop.permute.xlu0 %2129
    %v2131 = vsel %vm272, %v2122, %v2124
    %v2132 = vsel %vm272, %v2124, %v2126
    %v2133 = vsel %vm272, %v2126, %v2128
    %v2134 = vsel %vm272, %v2128, %v2130
    %2139 = vst [vmem:[#allocation3 + $0xe0] sm:$0xf] %v2131
    %2140 = vst [vmem:[#allocation3 + $0xe8] sm:$0xf] %v2132
    %2141 = vst [vmem:[#allocation3 + $0xf0] sm:$0xf] %v2133
    %2142 = vst [vmem:[#allocation3 + $0xf8] sm:$0xf] %v2134
    %v2143 = vld [vmem:[#allocation2 + $0x8] sm:$0xf]
    %v2144 = vld [vmem:[#allocation2 + $0x10] sm:$0xf]
    %v2145 = vld [vmem:[#allocation2 + $0x18] sm:$0xf]
    %v2146 = vld [vmem:[#allocation2 + $0x20] sm:$0xf]
    %v2147 = vld [vmem:[#allocation2 + $0x28] sm:$0xf]
    %v2148 = vld [vmem:[%s950] sm:$0xf]
    %v2151 = vunpack.c.l.s4 1966171168
    %v2152 = vunpack.c.0.s8 %v2151
    %v2153 = vlaneseq
    %v2154 = vshrl.u32 %v2153, 7
    %v2155 = vsub.s32 %v2152, %v2154
    %v2156 = vrot.slane %v2148, %v2155
    %v2157 = vcombine.high %v2156, %v2156
    %v2159 = vunpack.c.l.s4 1966171168
    %v2160 = vunpack.c.0.s8 %v2159
    %v2161 = vlaneseq
    %v2162 = vshrl.u32 %v2161, 7
    %v2163 = vsub.s32 %v2160, %v2162
    %v2164 = vrot.slane %v2156, %v2163
    %v2166 = vunpack.c.l.s4 1966171168
    %v2167 = vunpack.c.0.s8 %v2166
    %v2168 = vlaneseq
    %v2169 = vshrl.u32 %v2168, 7
    %v2170 = vsub.s32 %v2167, %v2169
    %v2171 = vrot.slane %v2157, %v2170
    %v2172 = vcombine.high %v2164, %v2164
    %v2173 = vcombine.high %v2171, %v2171
    %v2175 = vpack.i.b16 %v2164, %v2164
    %v2177 = vlaneseq
    %v2178 = vshrl.u32 %v2177, 7
    %v2179 = vsub.s32 0, %v2178
    %v2180 = vrot.slane %v2175, %v2179
    %v2182 = vpack.i.b16 %v2171, %v2171
    %v2184 = vlaneseq
    %v2185 = vshrl.u32 %v2184, 7
    %v2186 = vsub.s32 0, %v2185
    %v2187 = vrot.slane %v2182, %v2186
    %v2189 = vpack.i.b16 %v2172, %v2172
    %v2191 = vlaneseq
    %v2192 = vshrl.u32 %v2191, 7
    %v2193 = vsub.s32 0, %v2192
    %v2194 = vrot.slane %v2189, %v2193
    %v2196 = vpack.i.b16 %v2173, %v2173
    %v2198 = vlaneseq
    %v2199 = vshrl.u32 %v2198, 7
    %v2200 = vsub.s32 0, %v2199
    %v2201 = vrot.slane %v2196, %v2200
    %2206 = vrot.lane.b32.xlu0 %v2180, 17
    %v2207 = vpop.permute.xlu0 %2206
    %2208 = vrot.lane.b32.xlu0 %v2187, 17
    %v2209 = vpop.permute.xlu0 %2208
    %2210 = vrot.lane.b32.xlu0 %v2194, 17
    %v2211 = vpop.permute.xlu0 %2210
    %2212 = vrot.lane.b32.xlu0 %v2201, 17
    %v2213 = vpop.permute.xlu0 %2212
    %v2214 = vsel %vm187, %v2207, %v2209
    %v2215 = vsel %vm187, %v2209, %v2211
    %v2216 = vsel %vm187, %v2211, %v2213
    %v2222 = vmul.bf16 %v2143, %v2207
    %v2223 = vmul.bf16 %v2144, %v2214
    %v2224 = vmul.bf16 %v2145, %v2215
    %v2225 = vmul.bf16 %v2146, %v2216
    %v2226 = vmul.bf16 %v2147, %v2213
    %2232 = vrot.lane.b32.xlu0 %v2222, 111
    %v2233 = vpop.permute.xlu0 %2232
    %2234 = vrot.lane.b32.xlu0 %v2223, 111
    %v2235 = vpop.permute.xlu0 %2234
    %2236 = vrot.lane.b32.xlu0 %v2224, 111
    %v2237 = vpop.permute.xlu0 %2236
    %2238 = vrot.lane.b32.xlu0 %v2225, 111
    %v2239 = vpop.permute.xlu0 %2238
    %2240 = vrot.lane.b32.xlu0 %v2226, 111
    %v2241 = vpop.permute.xlu0 %2240
    %v2242 = vsel %vm158, %v2233, %v2235
    %v2243 = vsel %vm158, %v2235, %v2237
    %v2244 = vsel %vm158, %v2237, %v2239
    %v2245 = vsel %vm158, %v2239, %v2241
    %2250 = vst [vmem:[#allocation3 + $0x100] sm:$0xf] %v2242
    %2251 = vst [vmem:[#allocation3 + $0x108] sm:$0xf] %v2243
    %2252 = vst [vmem:[#allocation3 + $0x110] sm:$0xf] %v2244
    %2253 = vst [vmem:[#allocation3 + $0x118] sm:$0xf] %v2245
    %v2254 = vld [vmem:[%s3] sm:$0xff]
    %v2255 = vld [vmem:[#allocation3] sm:$0xff]
    %v2256 = vld [vmem:[#allocation3 + $0x8] sm:$0xff]
    %v2257 = vld [vmem:[#allocation3 + $0x10] sm:$0xff]
    %v2258 = vld [vmem:[#allocation3 + $0x18] sm:$0xff]
    %v2259 = vld [vmem:[#allocation3 + $0x20] sm:$0xff]
    %v2260 = vld [vmem:[#allocation3 + $0x28] sm:$0xff]
    %v2261 = vld [vmem:[#allocation3 + $0x30] sm:$0xff]
    %v2262 = vld [vmem:[#allocation3 + $0x38] sm:$0xff]
    %v2263 = vld [vmem:[#allocation3 + $0x40] sm:$0xff]
    %v2264 = vld [vmem:[#allocation3 + $0x48] sm:$0xff]
    %v2265 = vld [vmem:[#allocation3 + $0x50] sm:$0xff]
    %v2266 = vld [vmem:[#allocation3 + $0x58] sm:$0xff]
    %v2267 = vld [vmem:[#allocation3 + $0x60] sm:$0xff]
    %v2268 = vld [vmem:[#allocation3 + $0x68] sm:$0xff]
    %v2269 = vld [vmem:[#allocation3 + $0x70] sm:$0xff]
    %v2270 = vld [vmem:[#allocation3 + $0x78] sm:$0xff]
    %v2271 = vld [vmem:[#allocation3 + $0x80] sm:$0xff]
    %v2272 = vld [vmem:[#allocation3 + $0x88] sm:$0xff]
    %v2273 = vld [vmem:[#allocation3 + $0x90] sm:$0xff]
    %v2274 = vld [vmem:[#allocation3 + $0x98] sm:$0xff]
    %v2275 = vld [vmem:[#allocation3 + $0xa0] sm:$0xff]
    %v2276 = vld [vmem:[#allocation3 + $0xa8] sm:$0xff]
    %v2277 = vld [vmem:[#allocation3 + $0xb0] sm:$0xff]
    %v2278 = vld [vmem:[#allocation3 + $0xb8] sm:$0xff]
    %v2279 = vld [vmem:[#allocation3 + $0xc0] sm:$0xff]
    %v2280 = vld [vmem:[#allocation3 + $0xc8] sm:$0xff]
    %v2281 = vld [vmem:[#allocation3 + $0xd0] sm:$0xff]
    %v2282 = vld [vmem:[#allocation3 + $0xd8] sm:$0xff]
    %v2283 = vld [vmem:[#allocation3 + $0xe0] sm:$0xff]
    %v2284 = vld [vmem:[#allocation3 + $0xe8] sm:$0xff]
    %v2285 = vld [vmem:[#allocation3 + $0xf0] sm:$0xff]
    %v2286 = vld [vmem:[#allocation3 + $0xf8] sm:$0xff]
    %v2287 = vld [vmem:[#allocation3 + $0x100] sm:$0xff]
    %v2288 = vld [vmem:[#allocation3 + $0x108] sm:$0xff]
    %v2289 = vld [vmem:[#allocation3 + $0x110] sm:$0xff]
    %v2290 = vld [vmem:[#allocation3 + $0x118] sm:$0xff]
    %v2292 = vunpack.c.l.b16 %v2254
    %v2293 = vunpack.c.h.b16 %v2254
    %v2294 = vpack.c.b16 %v2292, %v2292
    %v2295 = vpack.c.b16 %v2293, %v2293
    %v2298 = vsel %vm1111, %v2295, 0
    %2300 = vmatprep.subr.bf16.mxu0 %v2256
    %2301 = vmatpush1.bf16.msra.mxu0 %v2255
    %2302 = vmatprep.subr.bf16.mxu0 %v2260
    %2303 = vmatpush1.bf16.msra.mxu0 %v2259
    %2304 = vmatprep.subr.bf16.mxu0 %v2264
    %2305 = vmatpush1.bf16.msra.mxu0 %v2263
    %2306 = vmatprep.subr.bf16.mxu0 %v2268
    %2307 = vmatpush1.bf16.msra.mxu0 %v2267
    %2308 = vmatprep.subr.bf16.mxu0 %v2272
    %2309 = vmatpush1.bf16.msra.mxu0 %v2271
    %2310 = vmatprep.subr.bf16.mxu0 %v2276
    %2311 = vmatpush1.bf16.msra.mxu0 %v2275
    %2312 = vmatprep.subr.bf16.mxu0 %v2280
    %2313 = vmatpush1.bf16.msra.mxu0 %v2279
    %2314 = vmatprep.subr.bf16.mxu0 %v2284
    %2315 = vmatpush1.bf16.msra.mxu0 %v2283
    %2316 = vmatprep.subr.bf16.mxu0 %v2288
    %2317 = vmatpush1.bf16.msra.mxu0 %v2287
    %2318 = vmatprep.subr.bf16.mxu0 0
    %2319 = vmatpush1.bf16.msra.mxu0 0
    %2320 = vmatprep.subr.bf16.mxu0 0
    %2321 = vmatpush1.bf16.msra.mxu0 0
    %2322 = vmatprep.subr.bf16.mxu0 0
    %2323 = vmatpush1.bf16.msra.mxu0 0
    %2324 = vmatprep.subr.bf16.mxu0 0
    %2325 = vmatpush1.bf16.msra.mxu0 0
    %2326 = vmatprep.subr.bf16.mxu0 0
    %2327 = vmatpush1.bf16.msra.mxu0 0
    %2328 = vmatprep.subr.bf16.mxu0 0
    %2329 = vmatpush1.bf16.msra.mxu0 0
    %2330 = vmatprep.subr.bf16.mxu0 0
    %2331 = vmatpush1.bf16.msra.mxu0 0
    %2332 = vmatprep.mubr.bf16.mxu0 %v2298
    %2333 = vmatmul.mubr.bf16.gmra.mrb[0].mxu0 %v2294
    %v2334 = vpop.f32.mrb[0].mxu0
    %v2335 = vadd.f32 0.0, %v2334
    %v2336 = vpop.f32.mrb[0].mxu0
    %v2337 = vadd.f32 0.0, %v2336
    %v2338 = vpop.f32.mrb[0].mxu0
    %v2339 = vpop.f32.mrb[0].mxu0
    %2340 = vdwg.mxu0
    %2341 = vmatprep.subr.bf16.mxu0 %v2258
    %2342 = vmatpush1.bf16.msra.mxu0 %v2257
    %2343 = vmatprep.subr.bf16.mxu0 %v2262
    %2344 = vmatpush1.bf16.msra.mxu0 %v2261
    %2345 = vmatprep.subr.bf16.mxu0 %v2266
    %2346 = vmatpush1.bf16.msra.mxu0 %v2265
    %2347 = vmatprep.subr.bf16.mxu0 %v2270
    %2348 = vmatpush1.bf16.msra.mxu0 %v2269
    %2349 = vmatprep.subr.bf16.mxu0 %v2274
    %2350 = vmatpush1.bf16.msra.mxu0 %v2273
    %2351 = vmatprep.subr.bf16.mxu0 %v2278
    %2352 = vmatpush1.bf16.msra.mxu0 %v2277
    %2353 = vmatprep.subr.bf16.mxu0 %v2282
    %2354 = vmatpush1.bf16.msra.mxu0 %v2281
    %2355 = vmatprep.subr.bf16.mxu0 %v2286
    %2356 = vmatpush1.bf16.msra.mxu0 %v2285
    %2357 = vmatprep.subr.bf16.mxu0 %v2290
    %2358 = vmatpush1.bf16.msra.mxu0 %v2289
    %2359 = vmatprep.subr.bf16.mxu0 0
    %2360 = vmatpush1.bf16.msra.mxu0 0
    %2361 = vmatprep.subr.bf16.mxu0 0
    %2362 = vmatpush1.bf16.msra.mxu0 0
    %2363 = vmatprep.subr.bf16.mxu0 0
    %2364 = vmatpush1.bf16.msra.mxu0 0
    %2365 = vmatprep.subr.bf16.mxu0 0
    %2366 = vmatpush1.bf16.msra.mxu0 0
    %2367 = vmatprep.subr.bf16.mxu0 0
    %2368 = vmatpush1.bf16.msra.mxu0 0
    %2369 = vmatprep.subr.bf16.mxu0 0
    %2370 = vmatpush1.bf16.msra.mxu0 0
    %2371 = vmatprep.subr.bf16.mxu0 0
    %2372 = vmatpush1.bf16.msra.mxu0 0
    %2373 = vmatprep.mubr.bf16.mxu0 %v2298
    %2374 = vmatmul.mubr.bf16.gmra.mrb[0].mxu0 %v2294
    %v2375 = vpop.f32.mrb[0].mxu0
    %v2376 = vadd.f32 0.0, %v2375
    %v2377 = vpop.f32.mrb[0].mxu0
    %v2378 = vadd.f32 0.0, %v2377
    %v2379 = vpop.f32.mrb[0].mxu0
    %v2380 = vpop.f32.mrb[0].mxu0
    %2381 = vdwg.mxu0
    %v2382 = vadd.f32 %v1163, %v2335
    %v2383 = vadd.f32 %v1165, %v2337
    %v2384 = vadd.f32 %v1214, %v2376
    %v2385 = vadd.f32 %v1216, %v2378
    %v2386 = vld [vmem:[%s5] sm:$0xff]
    %2388 = vset.pattern.permute.xlu0 0
    %2389 = vperm.xlu0 %2388, %v2386
    %v2390 = vpop.permute.xlu0 %2389
    %v2392 = vadd.f32 %v2382, %v2390
    %v2393 = vadd.f32 %v2383, %v2390
    %v2394 = vadd.f32 %v2384, %v2390
    %v2395 = vadd.f32 %v2385, %v2390
    %v2396 = vtanh.pop %v2392
    %v2397 = vtanh.pop %v2393
    %v2398 = vtanh.pop %v2394
    %v2399 = vtanh.pop %v2395
    %v2400 = vsub.f32 %v2396, %v30
    %v2401 = vsub.f32 %v2397, %v31
    %v2402 = vsub.f32 %v2398, %v32
    %v2403 = vsub.f32 %v2399, %v33
    %v2404 = vmul.f32 %v1281, %v2400
    %v2405 = vmul.f32 %v1283, %v2401
    %v2406 = vmul.f32 %v1285, %v2402
    %v2407 = vmul.f32 %v1287, %v2403
    %v2408 = vadd.f32 %v30, %v2404
    %v2409 = vadd.f32 %v31, %v2405
    %v2410 = vadd.f32 %v32, %v2406
    %v2411 = vadd.f32 %v33, %v2407
    %2412 = vst [vmem:[#allocation4] sm:$0xff] %v2408
    %2413 = vst [vmem:[#allocation4 + $0x8] sm:$0xff] %v2409
    %2414 = vst [vmem:[#allocation4 + $0x10] sm:$0xff] %v2410
    %2415 = vst [vmem:[#allocation4 + $0x18] sm:$0xff] %v2411
    // Predicated region
    $region30: #{tpu_custom_call.1} parent=1 // pred_check
      _
    $region31: #{tpu_custom_call.1} parent=1 // pred_check_branch
      %2417 = sbr.rel (0) target = $region33
    $region32: #{tpu_custom_call.1} parent=1 // pred_region
      %s2419 = ssub.s32 512, 512
      %2420 = vsyncadd [#allocation5], %s2419
      %s2422 = sshll.u32 [#allocation4], 4
      %s2423 = int_to_ptr.vmem [resolvable:$true] %s2422
      %2425 = dma.vmem_to_hbm [thread:$0]  %s2423, 512, %s7, [#allocation5]
    $region33: #{tpu_custom_call.1} parent=1 // pred_fallthru
      _
    // Predicated region
    $region34: #{tpu_custom_call.1} parent=1 // pred_check
      _
    $region35: #{tpu_custom_call.1} parent=1 // pred_check_branch
      %2427 = sbr.rel (0) target = $region37
    $region36: #{tpu_custom_call.1} parent=1 // pred_region
      %2428 = dma.done [#allocation5], 512
    $region37: #{tpu_custom_call.1} parent=1 // pred_fallthru
      _
    %2429 = vsyncpa [#allocation5], 1

</llo_original>
